<compile_context>
chip_gen: v6e
topology: v6e:2x2x1
jax: 0.10.0
libtpu: 0.0.40
codegen_flags: <defaults>
</compile_context>

<pallas_src>
import functools

import jax
import jax.numpy as jnp
from jax import lax
from jax.experimental import pallas as pl
from jax.experimental.pallas import tpu as pltpu

EPS = 1e-5     # nn.LayerNorm default
LANE = 128     # TPU lane width


def _round_up(n, m):
    return ((n + m - 1) // m) * m


def _masked_layernorm(h, gamma, beta, n_real, mask):
    """LayerNorm over the first `n_real` lanes of a lane-padded activation.

    `h` must have exactly-zero padded lanes (guaranteed by zero-padded
    weights/biases). Uses biased variance, matching nn.LayerNorm.
    """
    inv_n = 1.0 / float(n_real)
    mean = jnp.sum(h, axis=-1, keepdims=True) * inv_n           # pad lanes are 0
    centered = jnp.where(mask, h - mean, 0.0)
    var = jnp.sum(centered * centered, axis=-1, keepdims=True) * inv_n
    xhat = centered * lax.rsqrt(var + EPS)
    # gamma/beta padded lanes are 0 -> padded lanes of the result stay 0.
    return xhat * gamma + beta


def qnetwork_kernel(
    x_ref,
    w1_ref, b1_ref, g1_ref, be1_ref,
    w2_ref, b2_ref, g2_ref, be2_ref,
    w3_ref, b3_ref,
    out_ref,
    *, h1_real, h2_real,
):
    x = x_ref[...]

    # Load small params once per grid step (no inner loop -> no re-broadcast).
    b1, g1, be1 = b1_ref[...], g1_ref[...], be1_ref[...]
    b2, g2, be2 = b2_ref[...], g2_ref[...], be2_ref[...]
    b3 = b3_ref[...]

    hp1 = w1_ref.shape[1]
    hp2 = w2_ref.shape[1]
    mask1 = lax.broadcasted_iota(jnp.int32, (1, hp1), 1) < h1_real
    mask2 = lax.broadcasted_iota(jnp.int32, (1, hp2), 1) < h2_real

    prec = lax.Precision.HIGHEST

    # fc1 -> ln1 -> relu   (padded output lanes of the dot are exactly 0)
    h = jnp.dot(x, w1_ref[...], preferred_element_type=jnp.float32,
                precision=prec) + b1
    h = jnp.maximum(_masked_layernorm(h, g1, be1, h1_real, mask1), 0.0)

    # fc2 -> ln2 -> relu
    h = jnp.dot(h, w2_ref[...], preferred_element_type=jnp.float32,
                precision=prec) + b2
    h = jnp.maximum(_masked_layernorm(h, g2, be2, h2_real, mask2), 0.0)

    # fc3 (lane-dense 128-wide padded output slab; wrapper slices real cols)
    out = jnp.dot(h, w3_ref[...], preferred_element_type=jnp.float32,
                  precision=prec) + b3
    out_ref[...] = out.astype(out_ref.dtype)


def qnetwork_forward(x, padded_params, real_dims, *, tile_b=512):
    """x: [B, input_size] f32. padded_params: lane-padded params (pad_params).
    real_dims: (input_size, hidden1, hidden2, output_size) un-padded sizes."""
    _, h1, h2, out_size = real_dims
    B, in_size = x.shape
    p = padded_params
    out_pad = p["w3"].shape[1]

    # Batch tile: largest of up to 512 rows (fits all VMEM budgets incl. v5e's
    # 16 MiB / v7x's 32 MiB scoped default with double buffering to spare).
    tb = min(tile_b, _round_up(B, 8))
    b_pad = _round_up(B, tb)
    if b_pad != B:
        x = jnp.pad(x, ((0, b_pad - B), (0, 0)))

    args = (
        x,
        p["w1"], p["b1"], p["g1"], p["be1"],
        p["w2"], p["b2"], p["g2"], p["be2"],
        p["w3"], p["b3"],
    )

    def resident(arr):
        # Full (tiny) array with a constant index_map -> DMA'd into VMEM once
        # and reused across every grid step.
        return pl.BlockSpec(arr.shape, lambda i: (0, 0))

    in_specs = [pl.BlockSpec((tb, in_size), lambda i: (i, 0))]
    in_specs += [resident(a) for a in args[1:]]

    kernel = functools.partial(qnetwork_kernel, h1_real=h1, h2_real=h2)

    out = pl.pallas_call(
        kernel,
        out_shape=jax.ShapeDtypeStruct((b_pad, out_pad), jnp.float32),
        grid=(b_pad // tb,),
        in_specs=in_specs,
        out_specs=pl.BlockSpec((tb, out_pad), lambda i: (i, 0)),
        compiler_params=pltpu.CompilerParams(
            dimension_semantics=("parallel",)),
    )(*args)

    return out[:B, :out_size]


def init_params(key, input_size, hidden_sizes, output_size):
    """nn.Linear-style init (uniform +/- 1/sqrt(fan_in)), LayerNorm gamma=1 beta=0.
    Weights stored [in, out] so the kernel computes x @ W + b."""
    h1, h2 = hidden_sizes
    k1, k2, k3, k4, k5, k6 = jax.random.split(key, 6)

    def linear(kw, kb, fan_in, fan_out):
        bound = 1.0 / jnp.sqrt(jnp.float32(fan_in))
        w = jax.random.uniform(kw, (fan_in, fan_out), jnp.float32, -bound, bound)
        b = jax.random.uniform(kb, (1, fan_out), jnp.float32, -bound, bound)
        return w, b

    w1, b1 = linear(k1, k2, input_size, h1)
    w2, b2 = linear(k3, k4, h1, h2)
    w3, b3 = linear(k5, k6, h2, output_size)

    return {
        "w1": w1, "b1": b1,
        "g1": jnp.ones((1, h1), jnp.float32), "be1": jnp.zeros((1, h1), jnp.float32),
        "w2": w2, "b2": b2,
        "g2": jnp.ones((1, h2), jnp.float32), "be2": jnp.zeros((1, h2), jnp.float32),
        "w3": w3, "b3": b3,
    }


def pad_params(params):
    """Zero-pad hidden/output feature dims to the 128-lane width.

    Zero pad columns/biases/gammas/betas guarantee padded activation lanes are
    exactly zero through the whole network, so results match the un-padded net.
    """
    def pad2(a, rows, cols):
        r, c = a.shape
        return jnp.pad(a, ((0, rows - r), (0, cols - c)))

    w1, w2, w3 = params["w1"], params["w2"], params["w3"]
    in_size = w1.shape[0]
    hp1 = _round_up(w1.shape[1], LANE)
    hp2 = _round_up(w2.shape[1], LANE)
    op = _round_up(w3.shape[1], LANE)

    return {
        "w1": pad2(w1, in_size, hp1), "b1": pad2(params["b1"], 1, hp1),
        "g1": pad2(params["g1"], 1, hp1), "be1": pad2(params["be1"], 1, hp1),
        "w2": pad2(w2, hp1, hp2), "b2": pad2(params["b2"], 1, hp2),
        "g2": pad2(params["g2"], 1, hp2), "be2": pad2(params["be2"], 1, hp2),
        "w3": pad2(w3, hp2, op), "b3": pad2(params["b3"], 1, op),
    }


def _layernorm_ref(x, gamma, beta):
    mean = jnp.mean(x, axis=-1, keepdims=True)
    var = jnp.mean((x - mean) ** 2, axis=-1, keepdims=True)
    return (x - mean) * lax.rsqrt(var + EPS) * gamma + beta


def qnetwork_ref(x, p):
    """Pure-JAX reference on the un-padded params (matches PyTorch module)."""
    prec = lax.Precision.HIGHEST
    h = jnp.maximum(_layernorm_ref(
        jnp.dot(x, p["w1"], precision=prec) + p["b1"], p["g1"], p["be1"]), 0.0)
    h = jnp.maximum(_layernorm_ref(
        jnp.dot(h, p["w2"], precision=prec) + p["b2"], p["g2"], p["be2"]), 0.0)
    return jnp.dot(h, p["w3"], precision=prec) + p["b3"]


if __name__ == "__main__":
    key = jax.random.PRNGKey(0)
    k_param, k_x = jax.random.split(key)

    input_size, hidden_sizes, output_size = 16, (32, 32), 4
    batch = 8

    params = init_params(k_param, input_size, hidden_sizes, output_size)
    padded = pad_params(params)
    x = jax.random.normal(k_x, (batch, input_size), jnp.float32)

    out = qnetwork_forward(
        x, padded, (input_size, hidden_sizes[0], hidden_sizes[1], output_size))
    out = jax.block_until_ready(out)

    ref = qnetwork_ref(x, params)
    assert out.shape == (batch, output_size)
    assert jnp.allclose(out, ref, atol=1e-5, rtol=1e-5), "mismatch vs reference"

    print("KERNEL_OK")
</pallas_src>

<mosaic_0001>
module attributes {stable_mosaic.version = 11 : i64} {
  func.func @qnetwork_kernel(%arg0: i32, %arg1: memref<8x16xf32, #tpu.memory_space<vmem>>, %arg2: memref<16x128xf32, #tpu.memory_space<vmem>>, %arg3: memref<1x128xf32, #tpu.memory_space<vmem>>, %arg4: memref<1x128xf32, #tpu.memory_space<vmem>>, %arg5: memref<1x128xf32, #tpu.memory_space<vmem>>, %arg6: memref<128x128xf32, #tpu.memory_space<vmem>>, %arg7: memref<1x128xf32, #tpu.memory_space<vmem>>, %arg8: memref<1x128xf32, #tpu.memory_space<vmem>>, %arg9: memref<1x128xf32, #tpu.memory_space<vmem>>, %arg10: memref<128x128xf32, #tpu.memory_space<vmem>>, %arg11: memref<1x128xf32, #tpu.memory_space<vmem>>, %arg12: memref<8x128xf32, #tpu.memory_space<vmem>>) attributes {dimension_semantics = [#tpu.dimension_semantics<parallel>], iteration_bounds = array<i64: 1>, scalar_prefetch = 0 : i64, scratch_operands = 0 : i64, tpu.core_type = #tpu.core_type<tc>, window_params = [{transform_indices = @transform_0, window_bounds = array<i64: 8, 16>}, {pipeline_mode = #tpu.pipeline_mode<synchronous>, transform_indices = @transform_1, window_bounds = array<i64: 16, 128>}, {pipeline_mode = #tpu.pipeline_mode<synchronous>, transform_indices = @transform_2, window_bounds = array<i64: 1, 128>}, {pipeline_mode = #tpu.pipeline_mode<synchronous>, transform_indices = @transform_3, window_bounds = array<i64: 1, 128>}, {pipeline_mode = #tpu.pipeline_mode<synchronous>, transform_indices = @transform_4, window_bounds = array<i64: 1, 128>}, {pipeline_mode = #tpu.pipeline_mode<synchronous>, transform_indices = @transform_5, window_bounds = array<i64: 128, 128>}, {pipeline_mode = #tpu.pipeline_mode<synchronous>, transform_indices = @transform_6, window_bounds = array<i64: 1, 128>}, {pipeline_mode = #tpu.pipeline_mode<synchronous>, transform_indices = @transform_7, window_bounds = array<i64: 1, 128>}, {pipeline_mode = #tpu.pipeline_mode<synchronous>, transform_indices = @transform_8, window_bounds = array<i64: 1, 128>}, {pipeline_mode = #tpu.pipeline_mode<synchronous>, transform_indices = @transform_9, window_bounds = array<i64: 128, 128>}, {pipeline_mode = #tpu.pipeline_mode<synchronous>, transform_indices = @transform_10, window_bounds = array<i64: 1, 128>}, {transform_indices = @transform_11, window_bounds = array<i64: 8, 128>}]} {
    %c0 = arith.constant 0 : index
    %c0_0 = arith.constant 0 : index
    %0 = vector.load %arg1[%c0, %c0_0] : memref<8x16xf32, #tpu.memory_space<vmem>>, vector<8x16xf32>
    %c0_1 = arith.constant 0 : index
    %c0_2 = arith.constant 0 : index
    %1 = vector.load %arg3[%c0_1, %c0_2] : memref<1x128xf32, #tpu.memory_space<vmem>>, vector<1x128xf32>
    %c0_3 = arith.constant 0 : index
    %c0_4 = arith.constant 0 : index
    %2 = vector.load %arg4[%c0_3, %c0_4] : memref<1x128xf32, #tpu.memory_space<vmem>>, vector<1x128xf32>
    %c0_5 = arith.constant 0 : index
    %c0_6 = arith.constant 0 : index
    %3 = vector.load %arg5[%c0_5, %c0_6] : memref<1x128xf32, #tpu.memory_space<vmem>>, vector<1x128xf32>
    %c0_7 = arith.constant 0 : index
    %c0_8 = arith.constant 0 : index
    %4 = vector.load %arg7[%c0_7, %c0_8] : memref<1x128xf32, #tpu.memory_space<vmem>>, vector<1x128xf32>
    %c0_9 = arith.constant 0 : index
    %c0_10 = arith.constant 0 : index
    %5 = vector.load %arg8[%c0_9, %c0_10] : memref<1x128xf32, #tpu.memory_space<vmem>>, vector<1x128xf32>
    %c0_11 = arith.constant 0 : index
    %c0_12 = arith.constant 0 : index
    %6 = vector.load %arg9[%c0_11, %c0_12] : memref<1x128xf32, #tpu.memory_space<vmem>>, vector<1x128xf32>
    %c0_13 = arith.constant 0 : index
    %c0_14 = arith.constant 0 : index
    %7 = vector.load %arg11[%c0_13, %c0_14] : memref<1x128xf32, #tpu.memory_space<vmem>>, vector<1x128xf32>
    %8 = tpu.iota {dimensions = array<i32: 1>} : vector<1x128xi32>
    %c32_i32 = arith.constant 32 : i32
    %9 = vector.broadcast %c32_i32 : i32 to vector<1x128xi32>
    %10 = arith.cmpi slt, %8, %9 : vector<1x128xi32>
    %11 = tpu.iota {dimensions = array<i32: 1>} : vector<1x128xi32>
    %c32_i32_15 = arith.constant 32 : i32
    %12 = vector.broadcast %c32_i32_15 : i32 to vector<1x128xi32>
    %13 = arith.cmpi slt, %11, %12 : vector<1x128xi32>
    %c0_16 = arith.constant 0 : index
    %c0_17 = arith.constant 0 : index
    %14 = vector.load %arg2[%c0_16, %c0_17] : memref<16x128xf32, #tpu.memory_space<vmem>>, vector<16x128xf32>
    %cst = arith.constant dense<0.000000e+00> : vector<8x128xf32>
    %15 = tpu.matmul %0, %14, %cst {dimension_numbers = #tpu.dot_dimension_numbers<[1], [0], [0], [1], [0, 0, 1, 1], [], []>, precision = #tpu.contract_precision<fp32>} : vector<8x16xf32>, vector<16x128xf32>, vector<8x128xf32> -> vector<8x128xf32>
    %16 = vector.broadcast %1 : vector<1x128xf32> to vector<8x128xf32>
    %17 = arith.addf %15, %16 : vector<8x128xf32>
    %cst_18 = arith.constant dense<0.000000e+00> : vector<8xf32>
    %18 = vector.multi_reduction <add>, %17, %cst_18 [1] : vector<8x128xf32> to vector<8xf32>
    %19 = vector.shape_cast %18 : vector<8xf32> to vector<8x1xf32>
    %cst_19 = arith.constant 3.125000e-02 : f32
    %20 = vector.broadcast %cst_19 : f32 to vector<8x1xf32>
    %21 = arith.mulf %19, %20 : vector<8x1xf32>
    %22 = vector.broadcast %21 : vector<8x1xf32> to vector<8x128xf32>
    %23 = arith.subf %17, %22 : vector<8x128xf32>
    %cst_20 = arith.constant 0.000000e+00 : f32
    %24 = vector.shape_cast %10 : vector<1x128xi1> to vector<1x128xi1>
    %25 = vector.broadcast %24 : vector<1x128xi1> to vector<8x128xi1>
    %26 = vector.broadcast %cst_20 : f32 to vector<8x128xf32>
    %27 = arith.select %25, %23, %26 : vector<8x128xi1>, vector<8x128xf32>
    %28 = arith.mulf %27, %27 : vector<8x128xf32>
    %cst_21 = arith.constant dense<0.000000e+00> : vector<8xf32>
    %29 = vector.multi_reduction <add>, %28, %cst_21 [1] : vector<8x128xf32> to vector<8xf32>
    %30 = vector.shape_cast %29 : vector<8xf32> to vector<8x1xf32>
    %cst_22 = arith.constant 3.125000e-02 : f32
    %31 = vector.broadcast %cst_22 : f32 to vector<8x1xf32>
    %32 = arith.mulf %30, %31 : vector<8x1xf32>
    %cst_23 = arith.constant 9.99999974E-6 : f32
    %33 = vector.broadcast %cst_23 : f32 to vector<8x1xf32>
    %34 = arith.addf %32, %33 : vector<8x1xf32>
    %35 = math.rsqrt %34 : vector<8x1xf32>
    %36 = vector.broadcast %35 : vector<8x1xf32> to vector<8x128xf32>
    %37 = arith.mulf %27, %36 : vector<8x128xf32>
    %38 = vector.broadcast %2 : vector<1x128xf32> to vector<8x128xf32>
    %39 = arith.mulf %37, %38 : vector<8x128xf32>
    %40 = vector.broadcast %3 : vector<1x128xf32> to vector<8x128xf32>
    %41 = arith.addf %39, %40 : vector<8x128xf32>
    %cst_24 = arith.constant 0.000000e+00 : f32
    %42 = vector.broadcast %cst_24 : f32 to vector<8x128xf32>
    %43 = arith.maximumf %41, %42 : vector<8x128xf32>
    %c0_25 = arith.constant 0 : index
    %c0_26 = arith.constant 0 : index
    %44 = vector.load %arg6[%c0_25, %c0_26] : memref<128x128xf32, #tpu.memory_space<vmem>>, vector<128x128xf32>
    %cst_27 = arith.constant dense<0.000000e+00> : vector<8x128xf32>
    %45 = tpu.matmul %43, %44, %cst_27 {dimension_numbers = #tpu.dot_dimension_numbers<[1], [0], [0], [1], [0, 0, 1, 1], [], []>, precision = #tpu.contract_precision<fp32>} : vector<8x128xf32>, vector<128x128xf32>, vector<8x128xf32> -> vector<8x128xf32>
    %46 = vector.broadcast %4 : vector<1x128xf32> to vector<8x128xf32>
    %47 = arith.addf %45, %46 : vector<8x128xf32>
    %cst_28 = arith.constant dense<0.000000e+00> : vector<8xf32>
    %48 = vector.multi_reduction <add>, %47, %cst_28 [1] : vector<8x128xf32> to vector<8xf32>
    %49 = vector.shape_cast %48 : vector<8xf32> to vector<8x1xf32>
    %cst_29 = arith.constant 3.125000e-02 : f32
    %50 = vector.broadcast %cst_29 : f32 to vector<8x1xf32>
    %51 = arith.mulf %49, %50 : vector<8x1xf32>
    %52 = vector.broadcast %51 : vector<8x1xf32> to vector<8x128xf32>
    %53 = arith.subf %47, %52 : vector<8x128xf32>
    %cst_30 = arith.constant 0.000000e+00 : f32
    %54 = vector.shape_cast %13 : vector<1x128xi1> to vector<1x128xi1>
    %55 = vector.broadcast %54 : vector<1x128xi1> to vector<8x128xi1>
    %56 = vector.broadcast %cst_30 : f32 to vector<8x128xf32>
    %57 = arith.select %55, %53, %56 : vector<8x128xi1>, vector<8x128xf32>
    %58 = arith.mulf %57, %57 : vector<8x128xf32>
    %cst_31 = arith.constant dense<0.000000e+00> : vector<8xf32>
    %59 = vector.multi_reduction <add>, %58, %cst_31 [1] : vector<8x128xf32> to vector<8xf32>
    %60 = vector.shape_cast %59 : vector<8xf32> to vector<8x1xf32>
    %cst_32 = arith.constant 3.125000e-02 : f32
    %61 = vector.broadcast %cst_32 : f32 to vector<8x1xf32>
    %62 = arith.mulf %60, %61 : vector<8x1xf32>
    %cst_33 = arith.constant 9.99999974E-6 : f32
    %63 = vector.broadcast %cst_33 : f32 to vector<8x1xf32>
    %64 = arith.addf %62, %63 : vector<8x1xf32>
    %65 = math.rsqrt %64 : vector<8x1xf32>
    %66 = vector.broadcast %65 : vector<8x1xf32> to vector<8x128xf32>
    %67 = arith.mulf %57, %66 : vector<8x128xf32>
    %68 = vector.broadcast %5 : vector<1x128xf32> to vector<8x128xf32>
    %69 = arith.mulf %67, %68 : vector<8x128xf32>
    %70 = vector.broadcast %6 : vector<1x128xf32> to vector<8x128xf32>
    %71 = arith.addf %69, %70 : vector<8x128xf32>
    %cst_34 = arith.constant 0.000000e+00 : f32
    %72 = vector.broadcast %cst_34 : f32 to vector<8x128xf32>
    %73 = arith.maximumf %71, %72 : vector<8x128xf32>
    %c0_35 = arith.constant 0 : index
    %c0_36 = arith.constant 0 : index
    %74 = vector.load %arg10[%c0_35, %c0_36] : memref<128x128xf32, #tpu.memory_space<vmem>>, vector<128x128xf32>
    %cst_37 = arith.constant dense<0.000000e+00> : vector<8x128xf32>
    %75 = tpu.matmul %73, %74, %cst_37 {dimension_numbers = #tpu.dot_dimension_numbers<[1], [0], [0], [1], [0, 0, 1, 1], [], []>, precision = #tpu.contract_precision<fp32>} : vector<8x128xf32>, vector<128x128xf32>, vector<8x128xf32> -> vector<8x128xf32>
    %76 = vector.broadcast %7 : vector<1x128xf32> to vector<8x128xf32>
    %77 = arith.addf %75, %76 : vector<8x128xf32>
    %c0_38 = arith.constant 0 : index
    %c0_39 = arith.constant 0 : index
    %78 = vector.load %arg12[%c0_38, %c0_39] : memref<8x128xf32, #tpu.memory_space<vmem>>, vector<8x128xf32>
    tpu.vector_store %arg12[%c0_38, %c0_39], %77 {strides = array<i32>} : memref<8x128xf32, #tpu.memory_space<vmem>>, vector<8x128xf32>,
    return
  }
  func.func @transform_0(%arg0: i32) -> (i32, i32) {
    %c0_i32 = arith.constant 0 : i32
    %c0_i32_0 = arith.constant 0 : i32
    return %arg0, %c0_i32 : i32, i32
  }
  func.func @transform_1(%arg0: i32) -> (i32, i32) {
    %c0_i32 = arith.constant 0 : i32
    %c0_i32_0 = arith.constant 0 : i32
    %c0_i32_1 = arith.constant 0 : i32
    return %c0_i32, %c0_i32_0 : i32, i32
  }
  func.func @transform_2(%arg0: i32) -> (i32, i32) {
    %c0_i32 = arith.constant 0 : i32
    %c0_i32_0 = arith.constant 0 : i32
    %c0_i32_1 = arith.constant 0 : i32
    return %c0_i32, %c0_i32_0 : i32, i32
  }
  func.func @transform_3(%arg0: i32) -> (i32, i32) {
    %c0_i32 = arith.constant 0 : i32
    %c0_i32_0 = arith.constant 0 : i32
    %c0_i32_1 = arith.constant 0 : i32
    return %c0_i32, %c0_i32_0 : i32, i32
  }
  func.func @transform_4(%arg0: i32) -> (i32, i32) {
    %c0_i32 = arith.constant 0 : i32
    %c0_i32_0 = arith.constant 0 : i32
    %c0_i32_1 = arith.constant 0 : i32
    return %c0_i32, %c0_i32_0 : i32, i32
  }
  func.func @transform_5(%arg0: i32) -> (i32, i32) {
    %c0_i32 = arith.constant 0 : i32
    %c0_i32_0 = arith.constant 0 : i32
    %c0_i32_1 = arith.constant 0 : i32
    return %c0_i32, %c0_i32_0 : i32, i32
  }
  func.func @transform_6(%arg0: i32) -> (i32, i32) {
    %c0_i32 = arith.constant 0 : i32
    %c0_i32_0 = arith.constant 0 : i32
    %c0_i32_1 = arith.constant 0 : i32
    return %c0_i32, %c0_i32_0 : i32, i32
  }
  func.func @transform_7(%arg0: i32) -> (i32, i32) {
    %c0_i32 = arith.constant 0 : i32
    %c0_i32_0 = arith.constant 0 : i32
    %c0_i32_1 = arith.constant 0 : i32
    return %c0_i32, %c0_i32_0 : i32, i32
  }
  func.func @transform_8(%arg0: i32) -> (i32, i32) {
    %c0_i32 = arith.constant 0 : i32
    %c0_i32_0 = arith.constant 0 : i32
    %c0_i32_1 = arith.constant 0 : i32
    return %c0_i32, %c0_i32_0 : i32, i32
  }
  func.func @transform_9(%arg0: i32) -> (i32, i32) {
    %c0_i32 = arith.constant 0 : i32
    %c0_i32_0 = arith.constant 0 : i32
    %c0_i32_1 = arith.constant 0 : i32
    return %c0_i32, %c0_i32_0 : i32, i32
  }
  func.func @transform_10(%arg0: i32) -> (i32, i32) {
    %c0_i32 = arith.constant 0 : i32
    %c0_i32_0 = arith.constant 0 : i32
    %c0_i32_1 = arith.constant 0 : i32
    return %c0_i32, %c0_i32_0 : i32, i32
  }
  func.func @transform_11(%arg0: i32) -> (i32, i32) {
    %c0_i32 = arith.constant 0 : i32
    %c0_i32_0 = arith.constant 0 : i32
    return %arg0, %c0_i32 : i32, i32
  }
}

</mosaic_0001>

<llo_original>
// kernel: tpu_custom_call.1
$region0: #{tpu_custom_call.1}
  #allocation0 [shape = 'u32[]', space=smem, size = 0x4, offset = 0x4, fixed_abs, tag = 'smem constant byte address 0x4 - core index']
  #allocation1 [shape = 'u32[144,128]{1,0:T(1,128)}', space=vmem, size = 0x12000, scoped, tag = 'internal scratch']
  %s0 = inlined_call_operand.hbm [shape: f32[8,16], index: 0, kind: input, shape index: {}]
  %s1 = inlined_call_operand.hbm [shape: f32[16,128], index: 1, kind: input, shape index: {}]
  %s2 = inlined_call_operand.vmem [shape: f32[1,128], index: 2, kind: input, shape index: {}]
  %s3 = inlined_call_operand.vmem [shape: f32[1,128], index: 3, kind: input, shape index: {}]
  %s4 = inlined_call_operand.vmem [shape: f32[1,128], index: 4, kind: input, shape index: {}]
  %s5 = inlined_call_operand.hbm [shape: f32[128,128], index: 5, kind: input, shape index: {}]
  %s6 = inlined_call_operand.vmem [shape: f32[1,128], index: 6, kind: input, shape index: {}]
  %s7 = inlined_call_operand.vmem [shape: f32[1,128], index: 7, kind: input, shape index: {}]
  %s8 = inlined_call_operand.vmem [shape: f32[1,128], index: 8, kind: input, shape index: {}]
  %s9 = inlined_call_operand.hbm [shape: f32[128,128], index: 9, kind: input, shape index: {}]
  %s10 = inlined_call_operand.vmem [shape: f32[1,128], index: 10, kind: input, shape index: {}]
  %s11 = inlined_call_operand.hbm [shape: f32[8,128], index: 11, kind: output, shape index: {}]
  %s12 = sld [smem:[#allocation0]]
  $region70: #{tpu_custom_call.1} parent=0
    _
  %s14 = ssub.s32 1, %s12
  %s15 = scalar_select 0, %s14, %s12
  $region1: #{tpu_custom_call.1} parent=0
    #allocation2 [shape = 'u8[4096]{0}', space=vmem, size = 0x1000, scoped, tag = 'input window, operand 0, single buffered']
    #allocation3 [shape = 's32[1]{0}', space=sflag, size = 0x4, scoped, tag = 'scoped memory for tpu_custom_call.1']
    #allocation4 [shape = 's32[1]{0}', space=sflag, size = 0x4, scoped, tag = 'scoped memory for tpu_custom_call.1']
    #allocation5 [shape = 'u8[8192]{0}', space=vmem, size = 0x2000, scoped, tag = 'input window, operand 1, single buffered']
    #allocation6 [shape = 's32[1]{0}', space=sflag, size = 0x4, scoped, tag = 'scoped memory for tpu_custom_call.1']
    #allocation7 [shape = 'u8[65536]{0}', space=vmem, size = 0x10000, scoped, tag = 'input window, operand 5, single buffered']
    #allocation8 [shape = 'u8[65536]{0}', space=vmem, size = 0x10000, scoped, tag = 'input window, operand 9, single buffered']
    #allocation9 [shape = 's32[1]{0}', space=sflag, size = 0x4, scoped, tag = 'scoped memory for tpu_custom_call.1']
    #allocation10 [shape = 'u8[4096]{0}', space=vmem, size = 0x1000, scoped, tag = 'output window, operand 0, single buffered']
    %16 = vsyncpa [#allocation3], 0
    %17 = vsyncpa [#allocation6], 0
    %18 = vsyncpa [#allocation9], 0
    %19 = vsyncpa [#allocation4], 0
    // Predicated region
    $region2: #{tpu_custom_call.1} parent=1 // pred_check
      _
    $region3: #{tpu_custom_call.1} parent=1 // pred_check_branch
      %21 = sbr.rel (0) target = $region5
    $region4: #{tpu_custom_call.1} parent=1 // pred_region
      %s23 = ssub.s32 128, 128
      %24 = vsyncadd [#allocation3], %s23
      %s26 = sshll.u32 [#allocation2], 4
      %s27 = int_to_ptr.vmem [resolvable:$true] %s26
      %29 = dma.hbm_to_vmem [thread:$0]  %s0, 128, %s27, [#allocation3]
    $region5: #{tpu_custom_call.1} parent=1 // pred_fallthru
      _
    // Predicated region
    $region6: #{tpu_custom_call.1} parent=1 // pred_check
      _
    $region7: #{tpu_custom_call.1} parent=1 // pred_check_branch
      %31 = sbr.rel (0) target = $region9
    $region8: #{tpu_custom_call.1} parent=1 // pred_region
      %s33 = ssub.s32 256, 256
      %34 = vsyncadd [#allocation6], %s33
      %s35 = sshll.u32 [#allocation5], 4
      %s36 = int_to_ptr.vmem [resolvable:$true] %s35
      %41 = dma.hbm_to_vmem [thread:$0]  %s1, 256, %s36, [#allocation6], 128, 128, 8
    $region9: #{tpu_custom_call.1} parent=1 // pred_fallthru
      _
    // Predicated region
    $region10: #{tpu_custom_call.1} parent=1 // pred_check
      _
    $region11: #{tpu_custom_call.1} parent=1 // pred_check_branch
      %43 = sbr.rel (0) target = $region13
    $region12: #{tpu_custom_call.1} parent=1 // pred_region
      _
    $region13: #{tpu_custom_call.1} parent=1 // pred_fallthru
      _
    // Predicated region
    $region14: #{tpu_custom_call.1} parent=1 // pred_check
      _
    $region15: #{tpu_custom_call.1} parent=1 // pred_check_branch
      %45 = sbr.rel (0) target = $region17
    $region16: #{tpu_custom_call.1} parent=1 // pred_region
      _
    $region17: #{tpu_custom_call.1} parent=1 // pred_fallthru
      _
    // Predicated region
    $region18: #{tpu_custom_call.1} parent=1 // pred_check
      _
    $region19: #{tpu_custom_call.1} parent=1 // pred_check_branch
      %47 = sbr.rel (0) target = $region21
    $region20: #{tpu_custom_call.1} parent=1 // pred_region
      _
    $region21: #{tpu_custom_call.1} parent=1 // pred_fallthru
      _
    // Predicated region
    $region22: #{tpu_custom_call.1} parent=1 // pred_check
      _
    $region23: #{tpu_custom_call.1} parent=1 // pred_check_branch
      %49 = sbr.rel (0) target = $region25
    $region24: #{tpu_custom_call.1} parent=1 // pred_region
      %s51 = ssub.s32 2048, 2048
      %52 = vsyncadd [#allocation6], %s51
      %s53 = sshll.u32 [#allocation7], 4
      %s54 = int_to_ptr.vmem [resolvable:$true] %s53
      %59 = dma.hbm_to_vmem [thread:$0]  %s5, 2048, %s54, [#allocation6], 128, 128, 8
    $region25: #{tpu_custom_call.1} parent=1 // pred_fallthru
      _
    // Predicated region
    $region26: #{tpu_custom_call.1} parent=1 // pred_check
      _
    $region27: #{tpu_custom_call.1} parent=1 // pred_check_branch
      %61 = sbr.rel (0) target = $region29
    $region28: #{tpu_custom_call.1} parent=1 // pred_region
      _
    $region29: #{tpu_custom_call.1} parent=1 // pred_fallthru
      _
    // Predicated region
    $region30: #{tpu_custom_call.1} parent=1 // pred_check
      _
    $region31: #{tpu_custom_call.1} parent=1 // pred_check_branch
      %63 = sbr.rel (0) target = $region33
    $region32: #{tpu_custom_call.1} parent=1 // pred_region
      _
    $region33: #{tpu_custom_call.1} parent=1 // pred_fallthru
      _
    // Predicated region
    $region34: #{tpu_custom_call.1} parent=1 // pred_check
      _
    $region35: #{tpu_custom_call.1} parent=1 // pred_check_branch
      %65 = sbr.rel (0) target = $region37
    $region36: #{tpu_custom_call.1} parent=1 // pred_region
      _
    $region37: #{tpu_custom_call.1} parent=1 // pred_fallthru
      _
    // Predicated region
    $region38: #{tpu_custom_call.1} parent=1 // pred_check
      _
    $region39: #{tpu_custom_call.1} parent=1 // pred_check_branch
      %67 = sbr.rel (0) target = $region41
    $region40: #{tpu_custom_call.1} parent=1 // pred_region
      %s69 = ssub.s32 2048, 2048
      %70 = vsyncadd [#allocation9], %s69
      %s71 = sshll.u32 [#allocation8], 4
      %s72 = int_to_ptr.vmem [resolvable:$true] %s71
      %77 = dma.hbm_to_vmem [thread:$0]  %s9, 2048, %s72, [#allocation9], 128, 128, 8
    $region41: #{tpu_custom_call.1} parent=1 // pred_fallthru
      _
    // Predicated region
    $region42: #{tpu_custom_call.1} parent=1 // pred_check
      _
    $region43: #{tpu_custom_call.1} parent=1 // pred_check_branch
      %79 = sbr.rel (0) target = $region45
    $region44: #{tpu_custom_call.1} parent=1 // pred_region
      _
    $region45: #{tpu_custom_call.1} parent=1 // pred_fallthru
      _
    // Predicated region
    $region46: #{tpu_custom_call.1} parent=1 // pred_check
      _
    $region47: #{tpu_custom_call.1} parent=1 // pred_check_branch
      %81 = sbr.rel (0) target = $region49
    $region48: #{tpu_custom_call.1} parent=1 // pred_region
      %82 = dma.done [#allocation3], 128
    $region49: #{tpu_custom_call.1} parent=1 // pred_fallthru
      _
    // Predicated region
    $region50: #{tpu_custom_call.1} parent=1 // pred_check
      _
    $region51: #{tpu_custom_call.1} parent=1 // pred_check_branch
      %84 = sbr.rel (0) target = $region53
    $region52: #{tpu_custom_call.1} parent=1 // pred_region
      %85 = dma.done [#allocation6], 256
    $region53: #{tpu_custom_call.1} parent=1 // pred_fallthru
      _
    // Predicated region
    $region54: #{tpu_custom_call.1} parent=1 // pred_check
      _
    $region55: #{tpu_custom_call.1} parent=1 // pred_check_branch
      %87 = sbr.rel (0) target = $region57
    $region56: #{tpu_custom_call.1} parent=1 // pred_region
      %88 = dma.done [#allocation6], 2048
    $region57: #{tpu_custom_call.1} parent=1 // pred_fallthru
      _
    // Predicated region
    $region58: #{tpu_custom_call.1} parent=1 // pred_check
      _
    $region59: #{tpu_custom_call.1} parent=1 // pred_check_branch
      %90 = sbr.rel (0) target = $region61
    $region60: #{tpu_custom_call.1} parent=1 // pred_region
      %91 = dma.done [#allocation9], 2048
    $region61: #{tpu_custom_call.1} parent=1 // pred_fallthru
      _
    %v92 = vld [vmem:[#allocation2] sm:$0xff]
    %v93 = vld [vmem:[%s2] sm:$0x1]
    %v94 = vld [vmem:[%s3] sm:$0x1]
    %v95 = vld [vmem:[%s4] sm:$0x1]
    %v96 = vld [vmem:[%s6] sm:$0x1]
    %v97 = vld [vmem:[%s7] sm:$0x1]
    %v98 = vld [vmem:[%s8] sm:$0x1]
    %v99 = vld [vmem:[%s10] sm:$0x1]
    %v100 = vlaneseq
    %v101 = vand.u32 %v100, 127
    %vm102 = vcmp.lt.s32.totalorder %v101, 32
    %v103 = vld [vmem:[#allocation5] sm:$0xff]
    %v104 = vld [vmem:[#allocation5 + $0x8] sm:$0xff]
    %v106 = vlaneseq
    %v107 = vshrl.u32 %v106, 7
    %v108 = vsub.s32 0, %v107
    %v109 = vrot.slane %v93, %v108
    %vm111 = vcmask 130048
    %v113 = vsel %vm111, %v92, 0
    %115 = vmatprep.subr.mxu0 0.0
    %116 = vmatpush1.msra.mxu0 0.0
    %117 = vmatprep.subr.mxu0 0.0
    %118 = vmatpush1.msra.mxu0 0.0
    %119 = vmatprep.subr.mxu0 0.0
    %120 = vmatpush1.msra.mxu0 0.0
    %121 = vmatprep.subr.mxu0 0.0
    %122 = vmatpush1.msra.mxu0 0.0
    %123 = vmatprep.subr.mxu0 0.0
    %124 = vmatpush1.msra.mxu0 0.0
    %125 = vmatprep.subr.mxu0 0.0
    %126 = vmatpush1.msra.mxu0 0.0
    %127 = vmatprep.subr.mxu0 0.0
    %128 = vmatpush1.msra.mxu0 0.0
    %129 = vmatprep.subr.mxu0 0.0
    %130 = vmatpush1.msra.mxu0 0.0
    %131 = vmatprep.subr.mxu0 0.0
    %132 = vmatpush1.msra.mxu0 0.0
    %133 = vmatprep.subr.mxu0 0.0
    %134 = vmatpush1.msra.mxu0 0.0
    %135 = vmatprep.subr.mxu0 0.0
    %136 = vmatpush1.msra.mxu0 0.0
    %137 = vmatprep.subr.mxu0 0.0
    %138 = vmatpush1.msra.mxu0 0.0
    %139 = vmatprep.subr.mxu0 0.0
    %140 = vmatpush1.msra.mxu0 0.0
    %141 = vmatprep.subr.mxu0 0.0
    %142 = vmatpush1.msra.mxu0 0.0
    %143 = vmatprep.subr.mxu0 0.0
    %v144 = vand.u32 %v104, 4294901760
    %145 = vmatpush1.msra.mxu0 %v144
    %146 = vmatprep.subr.mxu0 0.0
    %v147 = vand.u32 %v103, 4294901760
    %148 = vmatpush1.msra.mxu0 %v147
    %149 = vmatprep.subr.mxu0 0.0
    %150 = vmatpush2.msra.mxu0 0.0
    %151 = vmatprep.subr.mxu0 0.0
    %152 = vmatpush2.msra.mxu0 0.0
    %153 = vmatprep.subr.mxu0 0.0
    %154 = vmatpush2.msra.mxu0 0.0
    %155 = vmatprep.subr.mxu0 0.0
    %156 = vmatpush2.msra.mxu0 0.0
    %157 = vmatprep.subr.mxu0 0.0
    %158 = vmatpush2.msra.mxu0 0.0
    %159 = vmatprep.subr.mxu0 0.0
    %160 = vmatpush2.msra.mxu0 0.0
    %161 = vmatprep.subr.mxu0 0.0
    %162 = vmatpush2.msra.mxu0 0.0
    %163 = vmatprep.subr.mxu0 0.0
    %164 = vmatpush2.msra.mxu0 0.0
    %165 = vmatprep.subr.mxu0 0.0
    %166 = vmatpush2.msra.mxu0 0.0
    %167 = vmatprep.subr.mxu0 0.0
    %168 = vmatpush2.msra.mxu0 0.0
    %169 = vmatprep.subr.mxu0 0.0
    %170 = vmatpush2.msra.mxu0 0.0
    %171 = vmatprep.subr.mxu0 0.0
    %172 = vmatpush2.msra.mxu0 0.0
    %173 = vmatprep.subr.mxu0 0.0
    %174 = vmatpush2.msra.mxu0 0.0
    %175 = vmatprep.subr.mxu0 0.0
    %176 = vmatpush2.msra.mxu0 0.0
    %177 = vmatprep.subr.mxu0 0.0
    %178 = vmatpush2.msra.mxu0 0.0
    %179 = vmatprep.subr.mxu0 0.0
    %180 = vmatpush2.msra.mxu0 0.0
    %181 = vmatprep.mubr.f32.mxu0 0.0
    %v182 = vand.u32 %v113, 4294901760
    %v183 = vsub.f32 %v113, %v182
    %v184 = vand.u32 %v183, 4294901760
    %v185 = vsub.f32 %v183, %v184
    %v186 = vand.u32 %v185, 4294901760
    %187 = vmatmul.mubr.f32.gmra.mxu0 %v186
    %v188 = vpop.f32.mrf.mxu0
    %v189 = vadd.f32 %v109, %v188
    %v190 = vpop.f32.mrf.mxu0
    %191 = vdwg.mxu0
    %192 = vmatprep.subr.mxu0 0.0
    %193 = vmatpush1.msra.mxu0 0.0
    %194 = vmatprep.subr.mxu0 0.0
    %195 = vmatpush1.msra.mxu0 0.0
    %196 = vmatprep.subr.mxu0 0.0
    %197 = vmatpush1.msra.mxu0 0.0
    %198 = vmatprep.subr.mxu0 0.0
    %199 = vmatpush1.msra.mxu0 0.0
    %200 = vmatprep.subr.mxu0 0.0
    %201 = vmatpush1.msra.mxu0 0.0
    %202 = vmatprep.subr.mxu0 0.0
    %203 = vmatpush1.msra.mxu0 0.0
    %204 = vmatprep.subr.mxu0 0.0
    %205 = vmatpush1.msra.mxu0 0.0
    %206 = vmatprep.subr.mxu0 0.0
    %207 = vmatpush1.msra.mxu0 0.0
    %208 = vmatprep.subr.mxu0 0.0
    %209 = vmatpush1.msra.mxu0 0.0
    %210 = vmatprep.subr.mxu0 0.0
    %211 = vmatpush1.msra.mxu0 0.0
    %212 = vmatprep.subr.mxu0 0.0
    %213 = vmatpush1.msra.mxu0 0.0
    %214 = vmatprep.subr.mxu0 0.0
    %215 = vmatpush1.msra.mxu0 0.0
    %216 = vmatprep.subr.mxu0 0.0
    %217 = vmatpush1.msra.mxu0 0.0
    %218 = vmatprep.subr.mxu0 0.0
    %219 = vmatpush1.msra.mxu0 0.0
    %220 = vmatprep.subr.mxu0 0.0
    %v221 = vand.u32 %v104, 4294901760
    %v222 = vsub.f32 %v104, %v221
    %v223 = vand.u32 %v222, 4294901760
    %v224 = vsub.f32 %v222, %v223
    %v225 = vand.u32 %v224, 4294901760
    %226 = vmatpush1.msra.mxu0 %v225
    %227 = vmatprep.subr.mxu0 0.0
    %v228 = vand.u32 %v103, 4294901760
    %v229 = vsub.f32 %v103, %v228
    %v230 = vand.u32 %v229, 4294901760
    %v231 = vsub.f32 %v229, %v230
    %v232 = vand.u32 %v231, 4294901760
    %233 = vmatpush1.msra.mxu0 %v232
    %234 = vmatprep.subr.mxu0 0.0
    %235 = vmatpush2.msra.mxu0 0.0
    %236 = vmatprep.subr.mxu0 0.0
    %237 = vmatpush2.msra.mxu0 0.0
    %238 = vmatprep.subr.mxu0 0.0
    %239 = vmatpush2.msra.mxu0 0.0
    %240 = vmatprep.subr.mxu0 0.0
    %241 = vmatpush2.msra.mxu0 0.0
    %242 = vmatprep.subr.mxu0 0.0
    %243 = vmatpush2.msra.mxu0 0.0
    %244 = vmatprep.subr.mxu0 0.0
    %245 = vmatpush2.msra.mxu0 0.0
    %246 = vmatprep.subr.mxu0 0.0
    %247 = vmatpush2.msra.mxu0 0.0
    %248 = vmatprep.subr.mxu0 0.0
    %249 = vmatpush2.msra.mxu0 0.0
    %250 = vmatprep.subr.mxu0 0.0
    %251 = vmatpush2.msra.mxu0 0.0
    %252 = vmatprep.subr.mxu0 0.0
    %253 = vmatpush2.msra.mxu0 0.0
    %254 = vmatprep.subr.mxu0 0.0
    %255 = vmatpush2.msra.mxu0 0.0
    %256 = vmatprep.subr.mxu0 0.0
    %257 = vmatpush2.msra.mxu0 0.0
    %258 = vmatprep.subr.mxu0 0.0
    %259 = vmatpush2.msra.mxu0 0.0
    %260 = vmatprep.subr.mxu0 0.0
    %261 = vmatpush2.msra.mxu0 0.0
    %262 = vmatprep.subr.mxu0 0.0
    %263 = vmatpush2.msra.mxu0 0.0
    %264 = vmatprep.subr.mxu0 0.0
    %265 = vmatpush2.msra.mxu0 0.0
    %266 = vmatprep.mubr.f32.mxu0 0.0
    %v267 = vand.u32 %v113, 4294901760
    %268 = vmatmul.mubr.f32.gmra.mxu0 %v267
    %v269 = vpop.f32.mrf.mxu0
    %v270 = vadd.f32 %v189, %v269
    %v271 = vpop.f32.mrf.mxu0
    %272 = vdwg.mxu0
    %273 = vmatprep.subr.mxu0 0.0
    %274 = vmatpush1.msra.mxu0 0.0
    %275 = vmatprep.subr.mxu0 0.0
    %276 = vmatpush1.msra.mxu0 0.0
    %277 = vmatprep.subr.mxu0 0.0
    %278 = vmatpush1.msra.mxu0 0.0
    %279 = vmatprep.subr.mxu0 0.0
    %280 = vmatpush1.msra.mxu0 0.0
    %281 = vmatprep.subr.mxu0 0.0
    %282 = vmatpush1.msra.mxu0 0.0
    %283 = vmatprep.subr.mxu0 0.0
    %284 = vmatpush1.msra.mxu0 0.0
    %285 = vmatprep.subr.mxu0 0.0
    %286 = vmatpush1.msra.mxu0 0.0
    %287 = vmatprep.subr.mxu0 0.0
    %288 = vmatpush1.msra.mxu0 0.0
    %289 = vmatprep.subr.mxu0 0.0
    %290 = vmatpush1.msra.mxu0 0.0
    %291 = vmatprep.subr.mxu0 0.0
    %292 = vmatpush1.msra.mxu0 0.0
    %293 = vmatprep.subr.mxu0 0.0
    %294 = vmatpush1.msra.mxu0 0.0
    %295 = vmatprep.subr.mxu0 0.0
    %296 = vmatpush1.msra.mxu0 0.0
    %297 = vmatprep.subr.mxu0 0.0
    %298 = vmatpush1.msra.mxu0 0.0
    %299 = vmatprep.subr.mxu0 0.0
    %300 = vmatpush1.msra.mxu0 0.0
    %301 = vmatprep.subr.mxu0 0.0
    %v302 = vand.u32 %v104, 4294901760
    %v303 = vsub.f32 %v104, %v302
    %304 = vmatpush1.msra.mxu0 %v303
    %305 = vmatprep.subr.mxu0 0.0
    %v306 = vand.u32 %v103, 4294901760
    %v307 = vsub.f32 %v103, %v306
    %308 = vmatpush1.msra.mxu0 %v307
    %309 = vmatprep.subr.mxu0 0.0
    %310 = vmatpush2.msra.mxu0 0.0
    %311 = vmatprep.subr.mxu0 0.0
    %312 = vmatpush2.msra.mxu0 0.0
    %313 = vmatprep.subr.mxu0 0.0
    %314 = vmatpush2.msra.mxu0 0.0
    %315 = vmatprep.subr.mxu0 0.0
    %316 = vmatpush2.msra.mxu0 0.0
    %317 = vmatprep.subr.mxu0 0.0
    %318 = vmatpush2.msra.mxu0 0.0
    %319 = vmatprep.subr.mxu0 0.0
    %320 = vmatpush2.msra.mxu0 0.0
    %321 = vmatprep.subr.mxu0 0.0
    %322 = vmatpush2.msra.mxu0 0.0
    %323 = vmatprep.subr.mxu0 0.0
    %324 = vmatpush2.msra.mxu0 0.0
    %325 = vmatprep.subr.mxu0 0.0
    %326 = vmatpush2.msra.mxu0 0.0
    %327 = vmatprep.subr.mxu0 0.0
    %328 = vmatpush2.msra.mxu0 0.0
    %329 = vmatprep.subr.mxu0 0.0
    %330 = vmatpush2.msra.mxu0 0.0
    %331 = vmatprep.subr.mxu0 0.0
    %332 = vmatpush2.msra.mxu0 0.0
    %333 = vmatprep.subr.mxu0 0.0
    %334 = vmatpush2.msra.mxu0 0.0
    %335 = vmatprep.subr.mxu0 0.0
    %336 = vmatpush2.msra.mxu0 0.0
    %337 = vmatprep.subr.mxu0 0.0
    %338 = vmatpush2.msra.mxu0 0.0
    %339 = vmatprep.subr.mxu0 0.0
    %340 = vmatpush2.msra.mxu0 0.0
    %341 = vmatprep.mubr.f32.mxu0 0.0
    %v342 = vand.u32 %v113, 4294901760
    %v343 = vsub.f32 %v113, %v342
    %344 = vmatmul.mubr.f32.gmra.mxu0 %v343
    %v345 = vpop.f32.mrf.mxu0
    %v346 = vadd.f32 %v270, %v345
    %v347 = vpop.f32.mrf.mxu0
    %348 = vdwg.mxu0
    %349 = vmatprep.subr.mxu0 0.0
    %350 = vmatpush1.msra.mxu0 0.0
    %351 = vmatprep.subr.mxu0 0.0
    %352 = vmatpush1.msra.mxu0 0.0
    %353 = vmatprep.subr.mxu0 0.0
    %354 = vmatpush1.msra.mxu0 0.0
    %355 = vmatprep.subr.mxu0 0.0
    %356 = vmatpush1.msra.mxu0 0.0
    %357 = vmatprep.subr.mxu0 0.0
    %358 = vmatpush1.msra.mxu0 0.0
    %359 = vmatprep.subr.mxu0 0.0
    %360 = vmatpush1.msra.mxu0 0.0
    %361 = vmatprep.subr.mxu0 0.0
    %362 = vmatpush1.msra.mxu0 0.0
    %363 = vmatprep.subr.mxu0 0.0
    %364 = vmatpush1.msra.mxu0 0.0
    %365 = vmatprep.subr.mxu0 0.0
    %366 = vmatpush1.msra.mxu0 0.0
    %367 = vmatprep.subr.mxu0 0.0
    %368 = vmatpush1.msra.mxu0 0.0
    %369 = vmatprep.subr.mxu0 0.0
    %370 = vmatpush1.msra.mxu0 0.0
    %371 = vmatprep.subr.mxu0 0.0
    %372 = vmatpush1.msra.mxu0 0.0
    %373 = vmatprep.subr.mxu0 0.0
    %374 = vmatpush1.msra.mxu0 0.0
    %375 = vmatprep.subr.mxu0 0.0
    %376 = vmatpush1.msra.mxu0 0.0
    %377 = vmatprep.subr.mxu0 0.0
    %v378 = vand.u32 %v104, 4294901760
    %379 = vmatpush1.msra.mxu0 %v378
    %380 = vmatprep.subr.mxu0 0.0
    %v381 = vand.u32 %v103, 4294901760
    %382 = vmatpush1.msra.mxu0 %v381
    %383 = vmatprep.subr.mxu0 0.0
    %384 = vmatpush2.msra.mxu0 0.0
    %385 = vmatprep.subr.mxu0 0.0
    %386 = vmatpush2.msra.mxu0 0.0
    %387 = vmatprep.subr.mxu0 0.0
    %388 = vmatpush2.msra.mxu0 0.0
    %389 = vmatprep.subr.mxu0 0.0
    %390 = vmatpush2.msra.mxu0 0.0
    %391 = vmatprep.subr.mxu0 0.0
    %392 = vmatpush2.msra.mxu0 0.0
    %393 = vmatprep.subr.mxu0 0.0
    %394 = vmatpush2.msra.mxu0 0.0
    %395 = vmatprep.subr.mxu0 0.0
    %396 = vmatpush2.msra.mxu0 0.0
    %397 = vmatprep.subr.mxu0 0.0
    %398 = vmatpush2.msra.mxu0 0.0
    %399 = vmatprep.subr.mxu0 0.0
    %400 = vmatpush2.msra.mxu0 0.0
    %401 = vmatprep.subr.mxu0 0.0
    %402 = vmatpush2.msra.mxu0 0.0
    %403 = vmatprep.subr.mxu0 0.0
    %404 = vmatpush2.msra.mxu0 0.0
    %405 = vmatprep.subr.mxu0 0.0
    %406 = vmatpush2.msra.mxu0 0.0
    %407 = vmatprep.subr.mxu0 0.0
    %408 = vmatpush2.msra.mxu0 0.0
    %409 = vmatprep.subr.mxu0 0.0
    %410 = vmatpush2.msra.mxu0 0.0
    %411 = vmatprep.subr.mxu0 0.0
    %412 = vmatpush2.msra.mxu0 0.0
    %413 = vmatprep.subr.mxu0 0.0
    %414 = vmatpush2.msra.mxu0 0.0
    %415 = vmatprep.mubr.f32.mxu0 0.0
    %v416 = vand.u32 %v113, 4294901760
    %v417 = vsub.f32 %v113, %v416
    %v418 = vand.u32 %v417, 4294901760
    %419 = vmatmul.mubr.f32.gmra.mxu0 %v418
    %v420 = vpop.f32.mrf.mxu0
    %v421 = vadd.f32 %v346, %v420
    %v422 = vpop.f32.mrf.mxu0
    %423 = vdwg.mxu0
    %424 = vmatprep.subr.mxu0 0.0
    %425 = vmatpush1.msra.mxu0 0.0
    %426 = vmatprep.subr.mxu0 0.0
    %427 = vmatpush1.msra.mxu0 0.0
    %428 = vmatprep.subr.mxu0 0.0
    %429 = vmatpush1.msra.mxu0 0.0
    %430 = vmatprep.subr.mxu0 0.0
    %431 = vmatpush1.msra.mxu0 0.0
    %432 = vmatprep.subr.mxu0 0.0
    %433 = vmatpush1.msra.mxu0 0.0
    %434 = vmatprep.subr.mxu0 0.0
    %435 = vmatpush1.msra.mxu0 0.0
    %436 = vmatprep.subr.mxu0 0.0
    %437 = vmatpush1.msra.mxu0 0.0
    %438 = vmatprep.subr.mxu0 0.0
    %439 = vmatpush1.msra.mxu0 0.0
    %440 = vmatprep.subr.mxu0 0.0
    %441 = vmatpush1.msra.mxu0 0.0
    %442 = vmatprep.subr.mxu0 0.0
    %443 = vmatpush1.msra.mxu0 0.0
    %444 = vmatprep.subr.mxu0 0.0
    %445 = vmatpush1.msra.mxu0 0.0
    %446 = vmatprep.subr.mxu0 0.0
    %447 = vmatpush1.msra.mxu0 0.0
    %448 = vmatprep.subr.mxu0 0.0
    %449 = vmatpush1.msra.mxu0 0.0
    %450 = vmatprep.subr.mxu0 0.0
    %451 = vmatpush1.msra.mxu0 0.0
    %452 = vmatprep.subr.mxu0 0.0
    %v453 = vand.u32 %v104, 4294901760
    %v454 = vsub.f32 %v104, %v453
    %v455 = vand.u32 %v454, 4294901760
    %456 = vmatpush1.msra.mxu0 %v455
    %457 = vmatprep.subr.mxu0 0.0
    %v458 = vand.u32 %v103, 4294901760
    %v459 = vsub.f32 %v103, %v458
    %v460 = vand.u32 %v459, 4294901760
    %461 = vmatpush1.msra.mxu0 %v460
    %462 = vmatprep.subr.mxu0 0.0
    %463 = vmatpush2.msra.mxu0 0.0
    %464 = vmatprep.subr.mxu0 0.0
    %465 = vmatpush2.msra.mxu0 0.0
    %466 = vmatprep.subr.mxu0 0.0
    %467 = vmatpush2.msra.mxu0 0.0
    %468 = vmatprep.subr.mxu0 0.0
    %469 = vmatpush2.msra.mxu0 0.0
    %470 = vmatprep.subr.mxu0 0.0
    %471 = vmatpush2.msra.mxu0 0.0
    %472 = vmatprep.subr.mxu0 0.0
    %473 = vmatpush2.msra.mxu0 0.0
    %474 = vmatprep.subr.mxu0 0.0
    %475 = vmatpush2.msra.mxu0 0.0
    %476 = vmatprep.subr.mxu0 0.0
    %477 = vmatpush2.msra.mxu0 0.0
    %478 = vmatprep.subr.mxu0 0.0
    %479 = vmatpush2.msra.mxu0 0.0
    %480 = vmatprep.subr.mxu0 0.0
    %481 = vmatpush2.msra.mxu0 0.0
    %482 = vmatprep.subr.mxu0 0.0
    %483 = vmatpush2.msra.mxu0 0.0
    %484 = vmatprep.subr.mxu0 0.0
    %485 = vmatpush2.msra.mxu0 0.0
    %486 = vmatprep.subr.mxu0 0.0
    %487 = vmatpush2.msra.mxu0 0.0
    %488 = vmatprep.subr.mxu0 0.0
    %489 = vmatpush2.msra.mxu0 0.0
    %490 = vmatprep.subr.mxu0 0.0
    %491 = vmatpush2.msra.mxu0 0.0
    %492 = vmatprep.subr.mxu0 0.0
    %493 = vmatpush2.msra.mxu0 0.0
    %494 = vmatprep.mubr.f32.mxu0 0.0
    %v495 = vand.u32 %v113, 4294901760
    %496 = vmatmul.mubr.f32.gmra.mxu0 %v495
    %v497 = vpop.f32.mrf.mxu0
    %v498 = vadd.f32 %v421, %v497
    %v499 = vpop.f32.mrf.mxu0
    %500 = vdwg.mxu0
    %501 = vmatprep.subr.mxu0 0.0
    %502 = vmatpush1.msra.mxu0 0.0
    %503 = vmatprep.subr.mxu0 0.0
    %504 = vmatpush1.msra.mxu0 0.0
    %505 = vmatprep.subr.mxu0 0.0
    %506 = vmatpush1.msra.mxu0 0.0
    %507 = vmatprep.subr.mxu0 0.0
    %508 = vmatpush1.msra.mxu0 0.0
    %509 = vmatprep.subr.mxu0 0.0
    %510 = vmatpush1.msra.mxu0 0.0
    %511 = vmatprep.subr.mxu0 0.0
    %512 = vmatpush1.msra.mxu0 0.0
    %513 = vmatprep.subr.mxu0 0.0
    %514 = vmatpush1.msra.mxu0 0.0
    %515 = vmatprep.subr.mxu0 0.0
    %516 = vmatpush1.msra.mxu0 0.0
    %517 = vmatprep.subr.mxu0 0.0
    %518 = vmatpush1.msra.mxu0 0.0
    %519 = vmatprep.subr.mxu0 0.0
    %520 = vmatpush1.msra.mxu0 0.0
    %521 = vmatprep.subr.mxu0 0.0
    %522 = vmatpush1.msra.mxu0 0.0
    %523 = vmatprep.subr.mxu0 0.0
    %524 = vmatpush1.msra.mxu0 0.0
    %525 = vmatprep.subr.mxu0 0.0
    %526 = vmatpush1.msra.mxu0 0.0
    %527 = vmatprep.subr.mxu0 0.0
    %528 = vmatpush1.msra.mxu0 0.0
    %529 = vmatprep.subr.mxu0 0.0
    %v530 = vand.u32 %v104, 4294901760
    %531 = vmatpush1.msra.mxu0 %v530
    %532 = vmatprep.subr.mxu0 0.0
    %v533 = vand.u32 %v103, 4294901760
    %534 = vmatpush1.msra.mxu0 %v533
    %535 = vmatprep.subr.mxu0 0.0
    %536 = vmatpush2.msra.mxu0 0.0
    %537 = vmatprep.subr.mxu0 0.0
    %538 = vmatpush2.msra.mxu0 0.0
    %539 = vmatprep.subr.mxu0 0.0
    %540 = vmatpush2.msra.mxu0 0.0
    %541 = vmatprep.subr.mxu0 0.0
    %542 = vmatpush2.msra.mxu0 0.0
    %543 = vmatprep.subr.mxu0 0.0
    %544 = vmatpush2.msra.mxu0 0.0
    %545 = vmatprep.subr.mxu0 0.0
    %546 = vmatpush2.msra.mxu0 0.0
    %547 = vmatprep.subr.mxu0 0.0
    %548 = vmatpush2.msra.mxu0 0.0
    %549 = vmatprep.subr.mxu0 0.0
    %550 = vmatpush2.msra.mxu0 0.0
    %551 = vmatprep.subr.mxu0 0.0
    %552 = vmatpush2.msra.mxu0 0.0
    %553 = vmatprep.subr.mxu0 0.0
    %554 = vmatpush2.msra.mxu0 0.0
    %555 = vmatprep.subr.mxu0 0.0
    %556 = vmatpush2.msra.mxu0 0.0
    %557 = vmatprep.subr.mxu0 0.0
    %558 = vmatpush2.msra.mxu0 0.0
    %559 = vmatprep.subr.mxu0 0.0
    %560 = vmatpush2.msra.mxu0 0.0
    %561 = vmatprep.subr.mxu0 0.0
    %562 = vmatpush2.msra.mxu0 0.0
    %563 = vmatprep.subr.mxu0 0.0
    %564 = vmatpush2.msra.mxu0 0.0
    %565 = vmatprep.subr.mxu0 0.0
    %566 = vmatpush2.msra.mxu0 0.0
    %567 = vmatprep.mubr.f32.mxu0 0.0
    %v568 = vand.u32 %v113, 4294901760
    %569 = vmatmul.mubr.f32.gmra.mxu0 %v568
    %v570 = vpop.f32.mrf.mxu0
    %v571 = vadd.f32 %v498, %v570
    %v572 = vpop.f32.mrf.mxu0
    %573 = vdwg.mxu0
    %574 = vadd.xlane.f32.xlu0 %v571
    %v575 = vpop.xlane.xlu0 %574
    %v576 = vmul.f32 %v575, 0.03125
    %v577 = vsub.f32 %v571, %v576
    %v578 = vsel %vm102, 1, 0
    %vm579 = vcmp.eq.s32.totalorder %v578, 1
    %v580 = vsel %vm579, %v577, 0.0
    %v581 = vmul.f32 %v580, %v580
    %582 = vadd.xlane.f32.xlu0 %v581
    %v583 = vpop.xlane.xlu0 %582
    %v584 = vmul.f32 %v583, 0.03125
    %v585 = vadd.f32 %v584, 1e-05
    %v586 = vrsqrt.pop %v585
    %v587 = vmul.f32 %v580, %v586
    %v589 = vlaneseq
    %v590 = vshrl.u32 %v589, 7
    %v591 = vsub.s32 0, %v590
    %v592 = vrot.slane %v94, %v591
    %v594 = vmul.f32 %v587, %v592
    %v596 = vlaneseq
    %v597 = vshrl.u32 %v596, 7
    %v598 = vsub.s32 0, %v597
    %v599 = vrot.slane %v95, %v598
    %v601 = vadd.f32 %v594, %v599
    %v602 = vmax.f32 %v601, 0.0
    %v603 = vld [vmem:[#allocation7] sm:$0xff]
    %v604 = vld [vmem:[#allocation7 + $0x8] sm:$0xff]
    %v605 = vld [vmem:[#allocation7 + $0x10] sm:$0xff]
    %v606 = vld [vmem:[#allocation7 + $0x18] sm:$0xff]
    %v607 = vld [vmem:[#allocation7 + $0x20] sm:$0xff]
    %v608 = vld [vmem:[#allocation7 + $0x28] sm:$0xff]
    %v609 = vld [vmem:[#allocation7 + $0x30] sm:$0xff]
    %v610 = vld [vmem:[#allocation7 + $0x38] sm:$0xff]
    %v611 = vld [vmem:[#allocation7 + $0x40] sm:$0xff]
    %v612 = vld [vmem:[#allocation7 + $0x48] sm:$0xff]
    %v613 = vld [vmem:[#allocation7 + $0x50] sm:$0xff]
    %v614 = vld [vmem:[#allocation7 + $0x58] sm:$0xff]
    %v615 = vld [vmem:[#allocation7 + $0x60] sm:$0xff]
    %v616 = vld [vmem:[#allocation7 + $0x68] sm:$0xff]
    %v617 = vld [vmem:[#allocation7 + $0x70] sm:$0xff]
    %v618 = vld [vmem:[#allocation7 + $0x78] sm:$0xff]
    %v620 = vlaneseq
    %v621 = vshrl.u32 %v620, 7
    %v622 = vsub.s32 0, %v621
    %v623 = vrot.slane %v96, %v622
    %625 = vmatprep.subr.mxu0 0.0
    %v626 = vand.u32 %v618, 4294901760
    %627 = vmatpush1.msra.mxu0 %v626
    %628 = vmatprep.subr.mxu0 0.0
    %v629 = vand.u32 %v617, 4294901760
    %630 = vmatpush1.msra.mxu0 %v629
    %631 = vmatprep.subr.mxu0 0.0
    %v632 = vand.u32 %v616, 4294901760
    %633 = vmatpush1.msra.mxu0 %v632
    %634 = vmatprep.subr.mxu0 0.0
    %v635 = vand.u32 %v615, 4294901760
    %636 = vmatpush1.msra.mxu0 %v635
    %637 = vmatprep.subr.mxu0 0.0
    %v638 = vand.u32 %v614, 4294901760
    %639 = vmatpush1.msra.mxu0 %v638
    %640 = vmatprep.subr.mxu0 0.0
    %v641 = vand.u32 %v613, 4294901760
    %642 = vmatpush1.msra.mxu0 %v641
    %643 = vmatprep.subr.mxu0 0.0
    %v644 = vand.u32 %v612, 4294901760
    %645 = vmatpush1.msra.mxu0 %v644
    %646 = vmatprep.subr.mxu0 0.0
    %v647 = vand.u32 %v611, 4294901760
    %648 = vmatpush1.msra.mxu0 %v647
    %649 = vmatprep.subr.mxu0 0.0
    %v650 = vand.u32 %v610, 4294901760
    %651 = vmatpush1.msra.mxu0 %v650
    %652 = vmatprep.subr.mxu0 0.0
    %v653 = vand.u32 %v609, 4294901760
    %654 = vmatpush1.msra.mxu0 %v653
    %655 = vmatprep.subr.mxu0 0.0
    %v656 = vand.u32 %v608, 4294901760
    %657 = vmatpush1.msra.mxu0 %v656
    %658 = vmatprep.subr.mxu0 0.0
    %v659 = vand.u32 %v607, 4294901760
    %660 = vmatpush1.msra.mxu0 %v659
    %661 = vmatprep.subr.mxu0 0.0
    %v662 = vand.u32 %v606, 4294901760
    %663 = vmatpush1.msra.mxu0 %v662
    %664 = vmatprep.subr.mxu0 0.0
    %v665 = vand.u32 %v605, 4294901760
    %666 = vmatpush1.msra.mxu0 %v665
    %667 = vmatprep.subr.mxu0 0.0
    %v668 = vand.u32 %v604, 4294901760
    %669 = vmatpush1.msra.mxu0 %v668
    %670 = vmatprep.subr.mxu0 0.0
    %v671 = vand.u32 %v603, 4294901760
    %672 = vmatpush1.msra.mxu0 %v671
    %673 = vmatprep.subr.mxu0 0.0
    %674 = vmatpush2.msra.mxu0 0.0
    %675 = vmatprep.subr.mxu0 0.0
    %676 = vmatpush2.msra.mxu0 0.0
    %677 = vmatprep.subr.mxu0 0.0
    %678 = vmatpush2.msra.mxu0 0.0
    %679 = vmatprep.subr.mxu0 0.0
    %680 = vmatpush2.msra.mxu0 0.0
    %681 = vmatprep.subr.mxu0 0.0
    %682 = vmatpush2.msra.mxu0 0.0
    %683 = vmatprep.subr.mxu0 0.0
    %684 = vmatpush2.msra.mxu0 0.0
    %685 = vmatprep.subr.mxu0 0.0
    %686 = vmatpush2.msra.mxu0 0.0
    %687 = vmatprep.subr.mxu0 0.0
    %688 = vmatpush2.msra.mxu0 0.0
    %689 = vmatprep.subr.mxu0 0.0
    %690 = vmatpush2.msra.mxu0 0.0
    %691 = vmatprep.subr.mxu0 0.0
    %692 = vmatpush2.msra.mxu0 0.0
    %693 = vmatprep.subr.mxu0 0.0
    %694 = vmatpush2.msra.mxu0 0.0
    %695 = vmatprep.subr.mxu0 0.0
    %696 = vmatpush2.msra.mxu0 0.0
    %697 = vmatprep.subr.mxu0 0.0
    %698 = vmatpush2.msra.mxu0 0.0
    %699 = vmatprep.subr.mxu0 0.0
    %700 = vmatpush2.msra.mxu0 0.0
    %701 = vmatprep.subr.mxu0 0.0
    %702 = vmatpush2.msra.mxu0 0.0
    %703 = vmatprep.subr.mxu0 0.0
    %704 = vmatpush2.msra.mxu0 0.0
    %705 = vmatprep.mubr.f32.mxu0 0.0
    %v706 = vand.u32 %v602, 4294901760
    %v707 = vsub.f32 %v602, %v706
    %v708 = vand.u32 %v707, 4294901760
    %v709 = vsub.f32 %v707, %v708
    %v710 = vand.u32 %v709, 4294901760
    %711 = vmatmul.mubr.f32.gmra.mxu0 %v710
    %v712 = vpop.f32.mrf.mxu0
    %v713 = vadd.f32 %v623, %v712
    %v714 = vpop.f32.mrf.mxu0
    %715 = vdwg.mxu0
    %716 = vmatprep.subr.mxu0 0.0
    %v717 = vand.u32 %v618, 4294901760
    %v718 = vsub.f32 %v618, %v717
    %v719 = vand.u32 %v718, 4294901760
    %v720 = vsub.f32 %v718, %v719
    %v721 = vand.u32 %v720, 4294901760
    %722 = vmatpush1.msra.mxu0 %v721
    %723 = vmatprep.subr.mxu0 0.0
    %v724 = vand.u32 %v617, 4294901760
    %v725 = vsub.f32 %v617, %v724
    %v726 = vand.u32 %v725, 4294901760
    %v727 = vsub.f32 %v725, %v726
    %v728 = vand.u32 %v727, 4294901760
    %729 = vmatpush1.msra.mxu0 %v728
    %730 = vmatprep.subr.mxu0 0.0
    %v731 = vand.u32 %v616, 4294901760
    %v732 = vsub.f32 %v616, %v731
    %v733 = vand.u32 %v732, 4294901760
    %v734 = vsub.f32 %v732, %v733
    %v735 = vand.u32 %v734, 4294901760
    %736 = vmatpush1.msra.mxu0 %v735
    %737 = vmatprep.subr.mxu0 0.0
    %v738 = vand.u32 %v615, 4294901760
    %v739 = vsub.f32 %v615, %v738
    %v740 = vand.u32 %v739, 4294901760
    %v741 = vsub.f32 %v739, %v740
    %v742 = vand.u32 %v741, 4294901760
    %743 = vmatpush1.msra.mxu0 %v742
    %744 = vmatprep.subr.mxu0 0.0
    %v745 = vand.u32 %v614, 4294901760
    %v746 = vsub.f32 %v614, %v745
    %v747 = vand.u32 %v746, 4294901760
    %v748 = vsub.f32 %v746, %v747
    %v749 = vand.u32 %v748, 4294901760
    %750 = vmatpush1.msra.mxu0 %v749
    %751 = vmatprep.subr.mxu0 0.0
    %v752 = vand.u32 %v613, 4294901760
    %v753 = vsub.f32 %v613, %v752
    %v754 = vand.u32 %v753, 4294901760
    %v755 = vsub.f32 %v753, %v754
    %v756 = vand.u32 %v755, 4294901760
    %757 = vmatpush1.msra.mxu0 %v756
    %758 = vmatprep.subr.mxu0 0.0
    %v759 = vand.u32 %v612, 4294901760
    %v760 = vsub.f32 %v612, %v759
    %v761 = vand.u32 %v760, 4294901760
    %v762 = vsub.f32 %v760, %v761
    %v763 = vand.u32 %v762, 4294901760
    %764 = vmatpush1.msra.mxu0 %v763
    %765 = vmatprep.subr.mxu0 0.0
    %v766 = vand.u32 %v611, 4294901760
    %v767 = vsub.f32 %v611, %v766
    %v768 = vand.u32 %v767, 4294901760
    %v769 = vsub.f32 %v767, %v768
    %v770 = vand.u32 %v769, 4294901760
    %771 = vmatpush1.msra.mxu0 %v770
    %772 = vmatprep.subr.mxu0 0.0
    %v773 = vand.u32 %v610, 4294901760
    %v774 = vsub.f32 %v610, %v773
    %v775 = vand.u32 %v774, 4294901760
    %v776 = vsub.f32 %v774, %v775
    %v777 = vand.u32 %v776, 4294901760
    %778 = vmatpush1.msra.mxu0 %v777
    %779 = vmatprep.subr.mxu0 0.0
    %v780 = vand.u32 %v609, 4294901760
    %v781 = vsub.f32 %v609, %v780
    %v782 = vand.u32 %v781, 4294901760
    %v783 = vsub.f32 %v781, %v782
    %v784 = vand.u32 %v783, 4294901760
    %785 = vmatpush1.msra.mxu0 %v784
    %786 = vmatprep.subr.mxu0 0.0
    %v787 = vand.u32 %v608, 4294901760
    %v788 = vsub.f32 %v608, %v787
    %v789 = vand.u32 %v788, 4294901760
    %v790 = vsub.f32 %v788, %v789
    %v791 = vand.u32 %v790, 4294901760
    %792 = vmatpush1.msra.mxu0 %v791
    %793 = vmatprep.subr.mxu0 0.0
    %v794 = vand.u32 %v607, 4294901760
    %v795 = vsub.f32 %v607, %v794
    %v796 = vand.u32 %v795, 4294901760
    %v797 = vsub.f32 %v795, %v796
    %v798 = vand.u32 %v797, 4294901760
    %799 = vmatpush1.msra.mxu0 %v798
    %800 = vmatprep.subr.mxu0 0.0
    %v801 = vand.u32 %v606, 4294901760
    %v802 = vsub.f32 %v606, %v801
    %v803 = vand.u32 %v802, 4294901760
    %v804 = vsub.f32 %v802, %v803
    %v805 = vand.u32 %v804, 4294901760
    %806 = vmatpush1.msra.mxu0 %v805
    %807 = vmatprep.subr.mxu0 0.0
    %v808 = vand.u32 %v605, 4294901760
    %v809 = vsub.f32 %v605, %v808
    %v810 = vand.u32 %v809, 4294901760
    %v811 = vsub.f32 %v809, %v810
    %v812 = vand.u32 %v811, 4294901760
    %813 = vmatpush1.msra.mxu0 %v812
    %814 = vmatprep.subr.mxu0 0.0
    %v815 = vand.u32 %v604, 4294901760
    %v816 = vsub.f32 %v604, %v815
    %v817 = vand.u32 %v816, 4294901760
    %v818 = vsub.f32 %v816, %v817
    %v819 = vand.u32 %v818, 4294901760
    %820 = vmatpush1.msra.mxu0 %v819
    %821 = vmatprep.subr.mxu0 0.0
    %v822 = vand.u32 %v603, 4294901760
    %v823 = vsub.f32 %v603, %v822
    %v824 = vand.u32 %v823, 4294901760
    %v825 = vsub.f32 %v823, %v824
    %v826 = vand.u32 %v825, 4294901760
    %827 = vmatpush1.msra.mxu0 %v826
    %828 = vmatprep.subr.mxu0 0.0
    %829 = vmatpush2.msra.mxu0 0.0
    %830 = vmatprep.subr.mxu0 0.0
    %831 = vmatpush2.msra.mxu0 0.0
    %832 = vmatprep.subr.mxu0 0.0
    %833 = vmatpush2.msra.mxu0 0.0
    %834 = vmatprep.subr.mxu0 0.0
    %835 = vmatpush2.msra.mxu0 0.0
    %836 = vmatprep.subr.mxu0 0.0
    %837 = vmatpush2.msra.mxu0 0.0
    %838 = vmatprep.subr.mxu0 0.0
    %839 = vmatpush2.msra.mxu0 0.0
    %840 = vmatprep.subr.mxu0 0.0
    %841 = vmatpush2.msra.mxu0 0.0
    %842 = vmatprep.subr.mxu0 0.0
    %843 = vmatpush2.msra.mxu0 0.0
    %844 = vmatprep.subr.mxu0 0.0
    %845 = vmatpush2.msra.mxu0 0.0
    %846 = vmatprep.subr.mxu0 0.0
    %847 = vmatpush2.msra.mxu0 0.0
    %848 = vmatprep.subr.mxu0 0.0
    %849 = vmatpush2.msra.mxu0 0.0
    %850 = vmatprep.subr.mxu0 0.0
    %851 = vmatpush2.msra.mxu0 0.0
    %852 = vmatprep.subr.mxu0 0.0
    %853 = vmatpush2.msra.mxu0 0.0
    %854 = vmatprep.subr.mxu0 0.0
    %855 = vmatpush2.msra.mxu0 0.0
    %856 = vmatprep.subr.mxu0 0.0
    %857 = vmatpush2.msra.mxu0 0.0
    %858 = vmatprep.subr.mxu0 0.0
    %859 = vmatpush2.msra.mxu0 0.0
    %860 = vmatprep.mubr.f32.mxu0 0.0
    %v861 = vand.u32 %v602, 4294901760
    %862 = vmatmul.mubr.f32.gmra.mxu0 %v861
    %v863 = vpop.f32.mrf.mxu0
    %v864 = vadd.f32 %v713, %v863
    %v865 = vpop.f32.mrf.mxu0
    %866 = vdwg.mxu0
    %867 = vmatprep.subr.mxu0 0.0
    %v868 = vand.u32 %v618, 4294901760
    %v869 = vsub.f32 %v618, %v868
    %870 = vmatpush1.msra.mxu0 %v869
    %871 = vmatprep.subr.mxu0 0.0
    %v872 = vand.u32 %v617, 4294901760
    %v873 = vsub.f32 %v617, %v872
    %874 = vmatpush1.msra.mxu0 %v873
    %875 = vmatprep.subr.mxu0 0.0
    %v876 = vand.u32 %v616, 4294901760
    %v877 = vsub.f32 %v616, %v876
    %878 = vmatpush1.msra.mxu0 %v877
    %879 = vmatprep.subr.mxu0 0.0
    %v880 = vand.u32 %v615, 4294901760
    %v881 = vsub.f32 %v615, %v880
    %882 = vmatpush1.msra.mxu0 %v881
    %883 = vmatprep.subr.mxu0 0.0
    %v884 = vand.u32 %v614, 4294901760
    %v885 = vsub.f32 %v614, %v884
    %886 = vmatpush1.msra.mxu0 %v885
    %887 = vmatprep.subr.mxu0 0.0
    %v888 = vand.u32 %v613, 4294901760
    %v889 = vsub.f32 %v613, %v888
    %890 = vmatpush1.msra.mxu0 %v889
    %891 = vmatprep.subr.mxu0 0.0
    %v892 = vand.u32 %v612, 4294901760
    %v893 = vsub.f32 %v612, %v892
    %894 = vmatpush1.msra.mxu0 %v893
    %895 = vmatprep.subr.mxu0 0.0
    %v896 = vand.u32 %v611, 4294901760
    %v897 = vsub.f32 %v611, %v896
    %898 = vmatpush1.msra.mxu0 %v897
    %899 = vmatprep.subr.mxu0 0.0
    %v900 = vand.u32 %v610, 4294901760
    %v901 = vsub.f32 %v610, %v900
    %902 = vmatpush1.msra.mxu0 %v901
    %903 = vmatprep.subr.mxu0 0.0
    %v904 = vand.u32 %v609, 4294901760
    %v905 = vsub.f32 %v609, %v904
    %906 = vmatpush1.msra.mxu0 %v905
    %907 = vmatprep.subr.mxu0 0.0
    %v908 = vand.u32 %v608, 4294901760
    %v909 = vsub.f32 %v608, %v908
    %910 = vmatpush1.msra.mxu0 %v909
    %911 = vmatprep.subr.mxu0 0.0
    %v912 = vand.u32 %v607, 4294901760
    %v913 = vsub.f32 %v607, %v912
    %914 = vmatpush1.msra.mxu0 %v913
    %915 = vmatprep.subr.mxu0 0.0
    %v916 = vand.u32 %v606, 4294901760
    %v917 = vsub.f32 %v606, %v916
    %918 = vmatpush1.msra.mxu0 %v917
    %919 = vmatprep.subr.mxu0 0.0
    %v920 = vand.u32 %v605, 4294901760
    %v921 = vsub.f32 %v605, %v920
    %922 = vmatpush1.msra.mxu0 %v921
    %923 = vmatprep.subr.mxu0 0.0
    %v924 = vand.u32 %v604, 4294901760
    %v925 = vsub.f32 %v604, %v924
    %926 = vmatpush1.msra.mxu0 %v925
    %927 = vmatprep.subr.mxu0 0.0
    %v928 = vand.u32 %v603, 4294901760
    %v929 = vsub.f32 %v603, %v928
    %930 = vmatpush1.msra.mxu0 %v929
    %931 = vmatprep.subr.mxu0 0.0
    %932 = vmatpush2.msra.mxu0 0.0
    %933 = vmatprep.subr.mxu0 0.0
    %934 = vmatpush2.msra.mxu0 0.0
    %935 = vmatprep.subr.mxu0 0.0
    %936 = vmatpush2.msra.mxu0 0.0
    %937 = vmatprep.subr.mxu0 0.0
    %938 = vmatpush2.msra.mxu0 0.0
    %939 = vmatprep.subr.mxu0 0.0
    %940 = vmatpush2.msra.mxu0 0.0
    %941 = vmatprep.subr.mxu0 0.0
    %942 = vmatpush2.msra.mxu0 0.0
    %943 = vmatprep.subr.mxu0 0.0
    %944 = vmatpush2.msra.mxu0 0.0
    %945 = vmatprep.subr.mxu0 0.0
    %946 = vmatpush2.msra.mxu0 0.0
    %947 = vmatprep.subr.mxu0 0.0
    %948 = vmatpush2.msra.mxu0 0.0
    %949 = vmatprep.subr.mxu0 0.0
    %950 = vmatpush2.msra.mxu0 0.0
    %951 = vmatprep.subr.mxu0 0.0
    %952 = vmatpush2.msra.mxu0 0.0
    %953 = vmatprep.subr.mxu0 0.0
    %954 = vmatpush2.msra.mxu0 0.0
    %955 = vmatprep.subr.mxu0 0.0
    %956 = vmatpush2.msra.mxu0 0.0
    %957 = vmatprep.subr.mxu0 0.0
    %958 = vmatpush2.msra.mxu0 0.0
    %959 = vmatprep.subr.mxu0 0.0
    %960 = vmatpush2.msra.mxu0 0.0
    %961 = vmatprep.subr.mxu0 0.0
    %962 = vmatpush2.msra.mxu0 0.0
    %963 = vmatprep.mubr.f32.mxu0 0.0
    %v964 = vand.u32 %v602, 4294901760
    %v965 = vsub.f32 %v602, %v964
    %966 = vmatmul.mubr.f32.gmra.mxu0 %v965
    %v967 = vpop.f32.mrf.mxu0
    %v968 = vadd.f32 %v864, %v967
    %v969 = vpop.f32.mrf.mxu0
    %970 = vdwg.mxu0
    %971 = vmatprep.subr.mxu0 0.0
    %v972 = vand.u32 %v618, 4294901760
    %973 = vmatpush1.msra.mxu0 %v972
    %974 = vmatprep.subr.mxu0 0.0
    %v975 = vand.u32 %v617, 4294901760
    %976 = vmatpush1.msra.mxu0 %v975
    %977 = vmatprep.subr.mxu0 0.0
    %v978 = vand.u32 %v616, 4294901760
    %979 = vmatpush1.msra.mxu0 %v978
    %980 = vmatprep.subr.mxu0 0.0
    %v981 = vand.u32 %v615, 4294901760
    %982 = vmatpush1.msra.mxu0 %v981
    %983 = vmatprep.subr.mxu0 0.0
    %v984 = vand.u32 %v614, 4294901760
    %985 = vmatpush1.msra.mxu0 %v984
    %986 = vmatprep.subr.mxu0 0.0
    %v987 = vand.u32 %v613, 4294901760
    %988 = vmatpush1.msra.mxu0 %v987
    %989 = vmatprep.subr.mxu0 0.0
    %v990 = vand.u32 %v612, 4294901760
    %991 = vmatpush1.msra.mxu0 %v990
    %992 = vmatprep.subr.mxu0 0.0
    %v993 = vand.u32 %v611, 4294901760
    %994 = vmatpush1.msra.mxu0 %v993
    %995 = vmatprep.subr.mxu0 0.0
    %v996 = vand.u32 %v610, 4294901760
    %997 = vmatpush1.msra.mxu0 %v996
    %998 = vmatprep.subr.mxu0 0.0
    %v999 = vand.u32 %v609, 4294901760
    %1000 = vmatpush1.msra.mxu0 %v999
    %1001 = vmatprep.subr.mxu0 0.0
    %v1002 = vand.u32 %v608, 4294901760
    %1003 = vmatpush1.msra.mxu0 %v1002
    %1004 = vmatprep.subr.mxu0 0.0
    %v1005 = vand.u32 %v607, 4294901760
    %1006 = vmatpush1.msra.mxu0 %v1005
    %1007 = vmatprep.subr.mxu0 0.0
    %v1008 = vand.u32 %v606, 4294901760
    %1009 = vmatpush1.msra.mxu0 %v1008
    %1010 = vmatprep.subr.mxu0 0.0
    %v1011 = vand.u32 %v605, 4294901760
    %1012 = vmatpush1.msra.mxu0 %v1011
    %1013 = vmatprep.subr.mxu0 0.0
    %v1014 = vand.u32 %v604, 4294901760
    %1015 = vmatpush1.msra.mxu0 %v1014
    %1016 = vmatprep.subr.mxu0 0.0
    %v1017 = vand.u32 %v603, 4294901760
    %1018 = vmatpush1.msra.mxu0 %v1017
    %1019 = vmatprep.subr.mxu0 0.0
    %1020 = vmatpush2.msra.mxu0 0.0
    %1021 = vmatprep.subr.mxu0 0.0
    %1022 = vmatpush2.msra.mxu0 0.0
    %1023 = vmatprep.subr.mxu0 0.0
    %1024 = vmatpush2.msra.mxu0 0.0
    %1025 = vmatprep.subr.mxu0 0.0
    %1026 = vmatpush2.msra.mxu0 0.0
    %1027 = vmatprep.subr.mxu0 0.0
    %1028 = vmatpush2.msra.mxu0 0.0
    %1029 = vmatprep.subr.mxu0 0.0
    %1030 = vmatpush2.msra.mxu0 0.0
    %1031 = vmatprep.subr.mxu0 0.0
    %1032 = vmatpush2.msra.mxu0 0.0
    %1033 = vmatprep.subr.mxu0 0.0
    %1034 = vmatpush2.msra.mxu0 0.0
    %1035 = vmatprep.subr.mxu0 0.0
    %1036 = vmatpush2.msra.mxu0 0.0
    %1037 = vmatprep.subr.mxu0 0.0
    %1038 = vmatpush2.msra.mxu0 0.0
    %1039 = vmatprep.subr.mxu0 0.0
    %1040 = vmatpush2.msra.mxu0 0.0
    %1041 = vmatprep.subr.mxu0 0.0
    %1042 = vmatpush2.msra.mxu0 0.0
    %1043 = vmatprep.subr.mxu0 0.0
    %1044 = vmatpush2.msra.mxu0 0.0
    %1045 = vmatprep.subr.mxu0 0.0
    %1046 = vmatpush2.msra.mxu0 0.0
    %1047 = vmatprep.subr.mxu0 0.0
    %1048 = vmatpush2.msra.mxu0 0.0
    %1049 = vmatprep.subr.mxu0 0.0
    %1050 = vmatpush2.msra.mxu0 0.0
    %1051 = vmatprep.mubr.f32.mxu0 0.0
    %v1052 = vand.u32 %v602, 4294901760
    %v1053 = vsub.f32 %v602, %v1052
    %v1054 = vand.u32 %v1053, 4294901760
    %1055 = vmatmul.mubr.f32.gmra.mxu0 %v1054
    %v1056 = vpop.f32.mrf.mxu0
    %v1057 = vadd.f32 %v968, %v1056
    %v1058 = vpop.f32.mrf.mxu0
    %1059 = vdwg.mxu0
    %1060 = vmatprep.subr.mxu0 0.0
    %v1061 = vand.u32 %v618, 4294901760
    %v1062 = vsub.f32 %v618, %v1061
    %v1063 = vand.u32 %v1062, 4294901760
    %1064 = vmatpush1.msra.mxu0 %v1063
    %1065 = vmatprep.subr.mxu0 0.0
    %v1066 = vand.u32 %v617, 4294901760
    %v1067 = vsub.f32 %v617, %v1066
    %v1068 = vand.u32 %v1067, 4294901760
    %1069 = vmatpush1.msra.mxu0 %v1068
    %1070 = vmatprep.subr.mxu0 0.0
    %v1071 = vand.u32 %v616, 4294901760
    %v1072 = vsub.f32 %v616, %v1071
    %v1073 = vand.u32 %v1072, 4294901760
    %1074 = vmatpush1.msra.mxu0 %v1073
    %1075 = vmatprep.subr.mxu0 0.0
    %v1076 = vand.u32 %v615, 4294901760
    %v1077 = vsub.f32 %v615, %v1076
    %v1078 = vand.u32 %v1077, 4294901760
    %1079 = vmatpush1.msra.mxu0 %v1078
    %1080 = vmatprep.subr.mxu0 0.0
    %v1081 = vand.u32 %v614, 4294901760
    %v1082 = vsub.f32 %v614, %v1081
    %v1083 = vand.u32 %v1082, 4294901760
    %1084 = vmatpush1.msra.mxu0 %v1083
    %1085 = vmatprep.subr.mxu0 0.0
    %v1086 = vand.u32 %v613, 4294901760
    %v1087 = vsub.f32 %v613, %v1086
    %v1088 = vand.u32 %v1087, 4294901760
    %1089 = vmatpush1.msra.mxu0 %v1088
    %1090 = vmatprep.subr.mxu0 0.0
    %v1091 = vand.u32 %v612, 4294901760
    %v1092 = vsub.f32 %v612, %v1091
    %v1093 = vand.u32 %v1092, 4294901760
    %1094 = vmatpush1.msra.mxu0 %v1093
    %1095 = vmatprep.subr.mxu0 0.0
    %v1096 = vand.u32 %v611, 4294901760
    %v1097 = vsub.f32 %v611, %v1096
    %v1098 = vand.u32 %v1097, 4294901760
    %1099 = vmatpush1.msra.mxu0 %v1098
    %1100 = vmatprep.subr.mxu0 0.0
    %v1101 = vand.u32 %v610, 4294901760
    %v1102 = vsub.f32 %v610, %v1101
    %v1103 = vand.u32 %v1102, 4294901760
    %1104 = vmatpush1.msra.mxu0 %v1103
    %1105 = vmatprep.subr.mxu0 0.0
    %v1106 = vand.u32 %v609, 4294901760
    %v1107 = vsub.f32 %v609, %v1106
    %v1108 = vand.u32 %v1107, 4294901760
    %1109 = vmatpush1.msra.mxu0 %v1108
    %1110 = vmatprep.subr.mxu0 0.0
    %v1111 = vand.u32 %v608, 4294901760
    %v1112 = vsub.f32 %v608, %v1111
    %v1113 = vand.u32 %v1112, 4294901760
    %1114 = vmatpush1.msra.mxu0 %v1113
    %1115 = vmatprep.subr.mxu0 0.0
    %v1116 = vand.u32 %v607, 4294901760
    %v1117 = vsub.f32 %v607, %v1116
    %v1118 = vand.u32 %v1117, 4294901760
    %1119 = vmatpush1.msra.mxu0 %v1118
    %1120 = vmatprep.subr.mxu0 0.0
    %v1121 = vand.u32 %v606, 4294901760
    %v1122 = vsub.f32 %v606, %v1121
    %v1123 = vand.u32 %v1122, 4294901760
    %1124 = vmatpush1.msra.mxu0 %v1123
    %1125 = vmatprep.subr.mxu0 0.0
    %v1126 = vand.u32 %v605, 4294901760
    %v1127 = vsub.f32 %v605, %v1126
    %v1128 = vand.u32 %v1127, 4294901760
    %1129 = vmatpush1.msra.mxu0 %v1128
    %1130 = vmatprep.subr.mxu0 0.0
    %v1131 = vand.u32 %v604, 4294901760
    %v1132 = vsub.f32 %v604, %v1131
    %v1133 = vand.u32 %v1132, 4294901760
    %1134 = vmatpush1.msra.mxu0 %v1133
    %1135 = vmatprep.subr.mxu0 0.0
    %v1136 = vand.u32 %v603, 4294901760
    %v1137 = vsub.f32 %v603, %v1136
    %v1138 = vand.u32 %v1137, 4294901760
    %1139 = vmatpush1.msra.mxu0 %v1138
    %1140 = vmatprep.subr.mxu0 0.0
    %1141 = vmatpush2.msra.mxu0 0.0
    %1142 = vmatprep.subr.mxu0 0.0
    %1143 = vmatpush2.msra.mxu0 0.0
    %1144 = vmatprep.subr.mxu0 0.0
    %1145 = vmatpush2.msra.mxu0 0.0
    %1146 = vmatprep.subr.mxu0 0.0
    %1147 = vmatpush2.msra.mxu0 0.0
    %1148 = vmatprep.subr.mxu0 0.0
    %1149 = vmatpush2.msra.mxu0 0.0
    %1150 = vmatprep.subr.mxu0 0.0
    %1151 = vmatpush2.msra.mxu0 0.0
    %1152 = vmatprep.subr.mxu0 0.0
    %1153 = vmatpush2.msra.mxu0 0.0
    %1154 = vmatprep.subr.mxu0 0.0
    %1155 = vmatpush2.msra.mxu0 0.0
    %1156 = vmatprep.subr.mxu0 0.0
    %1157 = vmatpush2.msra.mxu0 0.0
    %1158 = vmatprep.subr.mxu0 0.0
    %1159 = vmatpush2.msra.mxu0 0.0
    %1160 = vmatprep.subr.mxu0 0.0
    %1161 = vmatpush2.msra.mxu0 0.0
    %1162 = vmatprep.subr.mxu0 0.0
    %1163 = vmatpush2.msra.mxu0 0.0
    %1164 = vmatprep.subr.mxu0 0.0
    %1165 = vmatpush2.msra.mxu0 0.0
    %1166 = vmatprep.subr.mxu0 0.0
    %1167 = vmatpush2.msra.mxu0 0.0
    %1168 = vmatprep.subr.mxu0 0.0
    %1169 = vmatpush2.msra.mxu0 0.0
    %1170 = vmatprep.subr.mxu0 0.0
    %1171 = vmatpush2.msra.mxu0 0.0
    %1172 = vmatprep.mubr.f32.mxu0 0.0
    %v1173 = vand.u32 %v602, 4294901760
    %1174 = vmatmul.mubr.f32.gmra.mxu0 %v1173
    %v1175 = vpop.f32.mrf.mxu0
    %v1176 = vadd.f32 %v1057, %v1175
    %v1177 = vpop.f32.mrf.mxu0
    %1178 = vdwg.mxu0
    %1179 = vmatprep.subr.mxu0 0.0
    %v1180 = vand.u32 %v618, 4294901760
    %1181 = vmatpush1.msra.mxu0 %v1180
    %1182 = vmatprep.subr.mxu0 0.0
    %v1183 = vand.u32 %v617, 4294901760
    %1184 = vmatpush1.msra.mxu0 %v1183
    %1185 = vmatprep.subr.mxu0 0.0
    %v1186 = vand.u32 %v616, 4294901760
    %1187 = vmatpush1.msra.mxu0 %v1186
    %1188 = vmatprep.subr.mxu0 0.0
    %v1189 = vand.u32 %v615, 4294901760
    %1190 = vmatpush1.msra.mxu0 %v1189
    %1191 = vmatprep.subr.mxu0 0.0
    %v1192 = vand.u32 %v614, 4294901760
    %1193 = vmatpush1.msra.mxu0 %v1192
    %1194 = vmatprep.subr.mxu0 0.0
    %v1195 = vand.u32 %v613, 4294901760
    %1196 = vmatpush1.msra.mxu0 %v1195
    %1197 = vmatprep.subr.mxu0 0.0
    %v1198 = vand.u32 %v612, 4294901760
    %1199 = vmatpush1.msra.mxu0 %v1198
    %1200 = vmatprep.subr.mxu0 0.0
    %v1201 = vand.u32 %v611, 4294901760
    %1202 = vmatpush1.msra.mxu0 %v1201
    %1203 = vmatprep.subr.mxu0 0.0
    %v1204 = vand.u32 %v610, 4294901760
    %1205 = vmatpush1.msra.mxu0 %v1204
    %1206 = vmatprep.subr.mxu0 0.0
    %v1207 = vand.u32 %v609, 4294901760
    %1208 = vmatpush1.msra.mxu0 %v1207
    %1209 = vmatprep.subr.mxu0 0.0
    %v1210 = vand.u32 %v608, 4294901760
    %1211 = vmatpush1.msra.mxu0 %v1210
    %1212 = vmatprep.subr.mxu0 0.0
    %v1213 = vand.u32 %v607, 4294901760
    %1214 = vmatpush1.msra.mxu0 %v1213
    %1215 = vmatprep.subr.mxu0 0.0
    %v1216 = vand.u32 %v606, 4294901760
    %1217 = vmatpush1.msra.mxu0 %v1216
    %1218 = vmatprep.subr.mxu0 0.0
    %v1219 = vand.u32 %v605, 4294901760
    %1220 = vmatpush1.msra.mxu0 %v1219
    %1221 = vmatprep.subr.mxu0 0.0
    %v1222 = vand.u32 %v604, 4294901760
    %1223 = vmatpush1.msra.mxu0 %v1222
    %1224 = vmatprep.subr.mxu0 0.0
    %v1225 = vand.u32 %v603, 4294901760
    %1226 = vmatpush1.msra.mxu0 %v1225
    %1227 = vmatprep.subr.mxu0 0.0
    %1228 = vmatpush2.msra.mxu0 0.0
    %1229 = vmatprep.subr.mxu0 0.0
    %1230 = vmatpush2.msra.mxu0 0.0
    %1231 = vmatprep.subr.mxu0 0.0
    %1232 = vmatpush2.msra.mxu0 0.0
    %1233 = vmatprep.subr.mxu0 0.0
    %1234 = vmatpush2.msra.mxu0 0.0
    %1235 = vmatprep.subr.mxu0 0.0
    %1236 = vmatpush2.msra.mxu0 0.0
    %1237 = vmatprep.subr.mxu0 0.0
    %1238 = vmatpush2.msra.mxu0 0.0
    %1239 = vmatprep.subr.mxu0 0.0
    %1240 = vmatpush2.msra.mxu0 0.0
    %1241 = vmatprep.subr.mxu0 0.0
    %1242 = vmatpush2.msra.mxu0 0.0
    %1243 = vmatprep.subr.mxu0 0.0
    %1244 = vmatpush2.msra.mxu0 0.0
    %1245 = vmatprep.subr.mxu0 0.0
    %1246 = vmatpush2.msra.mxu0 0.0
    %1247 = vmatprep.subr.mxu0 0.0
    %1248 = vmatpush2.msra.mxu0 0.0
    %1249 = vmatprep.subr.mxu0 0.0
    %1250 = vmatpush2.msra.mxu0 0.0
    %1251 = vmatprep.subr.mxu0 0.0
    %1252 = vmatpush2.msra.mxu0 0.0
    %1253 = vmatprep.subr.mxu0 0.0
    %1254 = vmatpush2.msra.mxu0 0.0
    %1255 = vmatprep.subr.mxu0 0.0
    %1256 = vmatpush2.msra.mxu0 0.0
    %1257 = vmatprep.subr.mxu0 0.0
    %1258 = vmatpush2.msra.mxu0 0.0
    %1259 = vmatprep.mubr.f32.mxu0 0.0
    %v1260 = vand.u32 %v602, 4294901760
    %1261 = vmatmul.mubr.f32.gmra.mxu0 %v1260
    %v1262 = vpop.f32.mrf.mxu0
    %v1263 = vadd.f32 %v1176, %v1262
    %v1264 = vpop.f32.mrf.mxu0
    %1265 = vdwg.mxu0
    %1266 = vadd.xlane.f32.xlu0 %v1263
    %v1267 = vpop.xlane.xlu0 %1266
    %v1268 = vmul.f32 %v1267, 0.03125
    %v1269 = vsub.f32 %v1263, %v1268
    %v1270 = vsel %vm579, %v1269, 0.0
    %v1271 = vmul.f32 %v1270, %v1270
    %1272 = vadd.xlane.f32.xlu0 %v1271
    %v1273 = vpop.xlane.xlu0 %1272
    %v1274 = vmul.f32 %v1273, 0.03125
    %v1275 = vadd.f32 %v1274, 1e-05
    %v1276 = vrsqrt.pop %v1275
    %v1277 = vmul.f32 %v1270, %v1276
    %v1279 = vlaneseq
    %v1280 = vshrl.u32 %v1279, 7
    %v1281 = vsub.s32 0, %v1280
    %v1282 = vrot.slane %v97, %v1281
    %v1284 = vmul.f32 %v1277, %v1282
    %v1286 = vlaneseq
    %v1287 = vshrl.u32 %v1286, 7
    %v1288 = vsub.s32 0, %v1287
    %v1289 = vrot.slane %v98, %v1288
    %v1291 = vadd.f32 %v1284, %v1289
    %v1292 = vmax.f32 %v1291, 0.0
    %v1293 = vld [vmem:[#allocation8] sm:$0xff]
    %v1294 = vld [vmem:[#allocation8 + $0x8] sm:$0xff]
    %v1295 = vld [vmem:[#allocation8 + $0x10] sm:$0xff]
    %v1296 = vld [vmem:[#allocation8 + $0x18] sm:$0xff]
    %v1297 = vld [vmem:[#allocation8 + $0x20] sm:$0xff]
    %v1298 = vld [vmem:[#allocation8 + $0x28] sm:$0xff]
    %v1299 = vld [vmem:[#allocation8 + $0x30] sm:$0xff]
    %v1300 = vld [vmem:[#allocation8 + $0x38] sm:$0xff]
    %v1301 = vld [vmem:[#allocation8 + $0x40] sm:$0xff]
    %v1302 = vld [vmem:[#allocation8 + $0x48] sm:$0xff]
    %v1303 = vld [vmem:[#allocation8 + $0x50] sm:$0xff]
    %v1304 = vld [vmem:[#allocation8 + $0x58] sm:$0xff]
    %v1305 = vld [vmem:[#allocation8 + $0x60] sm:$0xff]
    %v1306 = vld [vmem:[#allocation8 + $0x68] sm:$0xff]
    %v1307 = vld [vmem:[#allocation8 + $0x70] sm:$0xff]
    %v1308 = vld [vmem:[#allocation8 + $0x78] sm:$0xff]
    %v1310 = vlaneseq
    %v1311 = vshrl.u32 %v1310, 7
    %v1312 = vsub.s32 0, %v1311
    %v1313 = vrot.slane %v99, %v1312
    %1315 = vmatprep.subr.mxu0 0.0
    %v1316 = vand.u32 %v1308, 4294901760
    %1317 = vmatpush1.msra.mxu0 %v1316
    %1318 = vmatprep.subr.mxu0 0.0
    %v1319 = vand.u32 %v1307, 4294901760
    %1320 = vmatpush1.msra.mxu0 %v1319
    %1321 = vmatprep.subr.mxu0 0.0
    %v1322 = vand.u32 %v1306, 4294901760
    %1323 = vmatpush1.msra.mxu0 %v1322
    %1324 = vmatprep.subr.mxu0 0.0
    %v1325 = vand.u32 %v1305, 4294901760
    %1326 = vmatpush1.msra.mxu0 %v1325
    %1327 = vmatprep.subr.mxu0 0.0
    %v1328 = vand.u32 %v1304, 4294901760
    %1329 = vmatpush1.msra.mxu0 %v1328
    %1330 = vmatprep.subr.mxu0 0.0
    %v1331 = vand.u32 %v1303, 4294901760
    %1332 = vmatpush1.msra.mxu0 %v1331
    %1333 = vmatprep.subr.mxu0 0.0
    %v1334 = vand.u32 %v1302, 4294901760
    %1335 = vmatpush1.msra.mxu0 %v1334
    %1336 = vmatprep.subr.mxu0 0.0
    %v1337 = vand.u32 %v1301, 4294901760
    %1338 = vmatpush1.msra.mxu0 %v1337
    %1339 = vmatprep.subr.mxu0 0.0
    %v1340 = vand.u32 %v1300, 4294901760
    %1341 = vmatpush1.msra.mxu0 %v1340
    %1342 = vmatprep.subr.mxu0 0.0
    %v1343 = vand.u32 %v1299, 4294901760
    %1344 = vmatpush1.msra.mxu0 %v1343
    %1345 = vmatprep.subr.mxu0 0.0
    %v1346 = vand.u32 %v1298, 4294901760
    %1347 = vmatpush1.msra.mxu0 %v1346
    %1348 = vmatprep.subr.mxu0 0.0
    %v1349 = vand.u32 %v1297, 4294901760
    %1350 = vmatpush1.msra.mxu0 %v1349
    %1351 = vmatprep.subr.mxu0 0.0
    %v1352 = vand.u32 %v1296, 4294901760
    %1353 = vmatpush1.msra.mxu0 %v1352
    %1354 = vmatprep.subr.mxu0 0.0
    %v1355 = vand.u32 %v1295, 4294901760
    %1356 = vmatpush1.msra.mxu0 %v1355
    %1357 = vmatprep.subr.mxu0 0.0
    %v1358 = vand.u32 %v1294, 4294901760
    %1359 = vmatpush1.msra.mxu0 %v1358
    %1360 = vmatprep.subr.mxu0 0.0
    %v1361 = vand.u32 %v1293, 4294901760
    %1362 = vmatpush1.msra.mxu0 %v1361
    %1363 = vmatprep.subr.mxu0 0.0
    %1364 = vmatpush2.msra.mxu0 0.0
    %1365 = vmatprep.subr.mxu0 0.0
    %1366 = vmatpush2.msra.mxu0 0.0
    %1367 = vmatprep.subr.mxu0 0.0
    %1368 = vmatpush2.msra.mxu0 0.0
    %1369 = vmatprep.subr.mxu0 0.0
    %1370 = vmatpush2.msra.mxu0 0.0
    %1371 = vmatprep.subr.mxu0 0.0
    %1372 = vmatpush2.msra.mxu0 0.0
    %1373 = vmatprep.subr.mxu0 0.0
    %1374 = vmatpush2.msra.mxu0 0.0
    %1375 = vmatprep.subr.mxu0 0.0
    %1376 = vmatpush2.msra.mxu0 0.0
    %1377 = vmatprep.subr.mxu0 0.0
    %1378 = vmatpush2.msra.mxu0 0.0
    %1379 = vmatprep.subr.mxu0 0.0
    %1380 = vmatpush2.msra.mxu0 0.0
    %1381 = vmatprep.subr.mxu0 0.0
    %1382 = vmatpush2.msra.mxu0 0.0
    %1383 = vmatprep.subr.mxu0 0.0
    %1384 = vmatpush2.msra.mxu0 0.0
    %1385 = vmatprep.subr.mxu0 0.0
    %1386 = vmatpush2.msra.mxu0 0.0
    %1387 = vmatprep.subr.mxu0 0.0
    %1388 = vmatpush2.msra.mxu0 0.0
    %1389 = vmatprep.subr.mxu0 0.0
    %1390 = vmatpush2.msra.mxu0 0.0
    %1391 = vmatprep.subr.mxu0 0.0
    %1392 = vmatpush2.msra.mxu0 0.0
    %1393 = vmatprep.subr.mxu0 0.0
    %1394 = vmatpush2.msra.mxu0 0.0
    %1395 = vmatprep.mubr.f32.mxu0 0.0
    %v1396 = vand.u32 %v1292, 4294901760
    %v1397 = vsub.f32 %v1292, %v1396
    %v1398 = vand.u32 %v1397, 4294901760
    %v1399 = vsub.f32 %v1397, %v1398
    %v1400 = vand.u32 %v1399, 4294901760
    %1401 = vmatmul.mubr.f32.gmra.mxu0 %v1400
    %v1402 = vpop.f32.mrf.mxu0
    %v1403 = vadd.f32 %v1313, %v1402
    %v1404 = vpop.f32.mrf.mxu0
    %1405 = vdwg.mxu0
    %1406 = vmatprep.subr.mxu0 0.0
    %v1407 = vand.u32 %v1308, 4294901760
    %v1408 = vsub.f32 %v1308, %v1407
    %v1409 = vand.u32 %v1408, 4294901760
    %v1410 = vsub.f32 %v1408, %v1409
    %v1411 = vand.u32 %v1410, 4294901760
    %1412 = vmatpush1.msra.mxu0 %v1411
    %1413 = vmatprep.subr.mxu0 0.0
    %v1414 = vand.u32 %v1307, 4294901760
    %v1415 = vsub.f32 %v1307, %v1414
    %v1416 = vand.u32 %v1415, 4294901760
    %v1417 = vsub.f32 %v1415, %v1416
    %v1418 = vand.u32 %v1417, 4294901760
    %1419 = vmatpush1.msra.mxu0 %v1418
    %1420 = vmatprep.subr.mxu0 0.0
    %v1421 = vand.u32 %v1306, 4294901760
    %v1422 = vsub.f32 %v1306, %v1421
    %v1423 = vand.u32 %v1422, 4294901760
    %v1424 = vsub.f32 %v1422, %v1423
    %v1425 = vand.u32 %v1424, 4294901760
    %1426 = vmatpush1.msra.mxu0 %v1425
    %1427 = vmatprep.subr.mxu0 0.0
    %v1428 = vand.u32 %v1305, 4294901760
    %v1429 = vsub.f32 %v1305, %v1428
    %v1430 = vand.u32 %v1429, 4294901760
    %v1431 = vsub.f32 %v1429, %v1430
    %v1432 = vand.u32 %v1431, 4294901760
    %1433 = vmatpush1.msra.mxu0 %v1432
    %1434 = vmatprep.subr.mxu0 0.0
    %v1435 = vand.u32 %v1304, 4294901760
    %v1436 = vsub.f32 %v1304, %v1435
    %v1437 = vand.u32 %v1436, 4294901760
    %v1438 = vsub.f32 %v1436, %v1437
    %v1439 = vand.u32 %v1438, 4294901760
    %1440 = vmatpush1.msra.mxu0 %v1439
    %1441 = vmatprep.subr.mxu0 0.0
    %v1442 = vand.u32 %v1303, 4294901760
    %v1443 = vsub.f32 %v1303, %v1442
    %v1444 = vand.u32 %v1443, 4294901760
    %v1445 = vsub.f32 %v1443, %v1444
    %v1446 = vand.u32 %v1445, 4294901760
    %1447 = vmatpush1.msra.mxu0 %v1446
    %1448 = vmatprep.subr.mxu0 0.0
    %v1449 = vand.u32 %v1302, 4294901760
    %v1450 = vsub.f32 %v1302, %v1449
    %v1451 = vand.u32 %v1450, 4294901760
    %v1452 = vsub.f32 %v1450, %v1451
    %v1453 = vand.u32 %v1452, 4294901760
    %1454 = vmatpush1.msra.mxu0 %v1453
    %1455 = vmatprep.subr.mxu0 0.0
    %v1456 = vand.u32 %v1301, 4294901760
    %v1457 = vsub.f32 %v1301, %v1456
    %v1458 = vand.u32 %v1457, 4294901760
    %v1459 = vsub.f32 %v1457, %v1458
    %v1460 = vand.u32 %v1459, 4294901760
    %1461 = vmatpush1.msra.mxu0 %v1460
    %1462 = vmatprep.subr.mxu0 0.0
    %v1463 = vand.u32 %v1300, 4294901760
    %v1464 = vsub.f32 %v1300, %v1463
    %v1465 = vand.u32 %v1464, 4294901760
    %v1466 = vsub.f32 %v1464, %v1465
    %v1467 = vand.u32 %v1466, 4294901760
    %1468 = vmatpush1.msra.mxu0 %v1467
    %1469 = vmatprep.subr.mxu0 0.0
    %v1470 = vand.u32 %v1299, 4294901760
    %v1471 = vsub.f32 %v1299, %v1470
    %v1472 = vand.u32 %v1471, 4294901760
    %v1473 = vsub.f32 %v1471, %v1472
    %v1474 = vand.u32 %v1473, 4294901760
    %1475 = vmatpush1.msra.mxu0 %v1474
    %1476 = vmatprep.subr.mxu0 0.0
    %v1477 = vand.u32 %v1298, 4294901760
    %v1478 = vsub.f32 %v1298, %v1477
    %v1479 = vand.u32 %v1478, 4294901760
    %v1480 = vsub.f32 %v1478, %v1479
    %v1481 = vand.u32 %v1480, 4294901760
    %1482 = vmatpush1.msra.mxu0 %v1481
    %1483 = vmatprep.subr.mxu0 0.0
    %v1484 = vand.u32 %v1297, 4294901760
    %v1485 = vsub.f32 %v1297, %v1484
    %v1486 = vand.u32 %v1485, 4294901760
    %v1487 = vsub.f32 %v1485, %v1486
    %v1488 = vand.u32 %v1487, 4294901760
    %1489 = vmatpush1.msra.mxu0 %v1488
    %1490 = vmatprep.subr.mxu0 0.0
    %v1491 = vand.u32 %v1296, 4294901760
    %v1492 = vsub.f32 %v1296, %v1491
    %v1493 = vand.u32 %v1492, 4294901760
    %v1494 = vsub.f32 %v1492, %v1493
    %v1495 = vand.u32 %v1494, 4294901760
    %1496 = vmatpush1.msra.mxu0 %v1495
    %1497 = vmatprep.subr.mxu0 0.0
    %v1498 = vand.u32 %v1295, 4294901760
    %v1499 = vsub.f32 %v1295, %v1498
    %v1500 = vand.u32 %v1499, 4294901760
    %v1501 = vsub.f32 %v1499, %v1500
    %v1502 = vand.u32 %v1501, 4294901760
    %1503 = vmatpush1.msra.mxu0 %v1502
    %1504 = vmatprep.subr.mxu0 0.0
    %v1505 = vand.u32 %v1294, 4294901760
    %v1506 = vsub.f32 %v1294, %v1505
    %v1507 = vand.u32 %v1506, 4294901760
    %v1508 = vsub.f32 %v1506, %v1507
    %v1509 = vand.u32 %v1508, 4294901760
    %1510 = vmatpush1.msra.mxu0 %v1509
    %1511 = vmatprep.subr.mxu0 0.0
    %v1512 = vand.u32 %v1293, 4294901760
    %v1513 = vsub.f32 %v1293, %v1512
    %v1514 = vand.u32 %v1513, 4294901760
    %v1515 = vsub.f32 %v1513, %v1514
    %v1516 = vand.u32 %v1515, 4294901760
    %1517 = vmatpush1.msra.mxu0 %v1516
    %1518 = vmatprep.subr.mxu0 0.0
    %1519 = vmatpush2.msra.mxu0 0.0
    %1520 = vmatprep.subr.mxu0 0.0
    %1521 = vmatpush2.msra.mxu0 0.0
    %1522 = vmatprep.subr.mxu0 0.0
    %1523 = vmatpush2.msra.mxu0 0.0
    %1524 = vmatprep.subr.mxu0 0.0
    %1525 = vmatpush2.msra.mxu0 0.0
    %1526 = vmatprep.subr.mxu0 0.0
    %1527 = vmatpush2.msra.mxu0 0.0
    %1528 = vmatprep.subr.mxu0 0.0
    %1529 = vmatpush2.msra.mxu0 0.0
    %1530 = vmatprep.subr.mxu0 0.0
    %1531 = vmatpush2.msra.mxu0 0.0
    %1532 = vmatprep.subr.mxu0 0.0
    %1533 = vmatpush2.msra.mxu0 0.0
    %1534 = vmatprep.subr.mxu0 0.0
    %1535 = vmatpush2.msra.mxu0 0.0
    %1536 = vmatprep.subr.mxu0 0.0
    %1537 = vmatpush2.msra.mxu0 0.0
    %1538 = vmatprep.subr.mxu0 0.0
    %1539 = vmatpush2.msra.mxu0 0.0
    %1540 = vmatprep.subr.mxu0 0.0
    %1541 = vmatpush2.msra.mxu0 0.0
    %1542 = vmatprep.subr.mxu0 0.0
    %1543 = vmatpush2.msra.mxu0 0.0
    %1544 = vmatprep.subr.mxu0 0.0
    %1545 = vmatpush2.msra.mxu0 0.0
    %1546 = vmatprep.subr.mxu0 0.0
    %1547 = vmatpush2.msra.mxu0 0.0
    %1548 = vmatprep.subr.mxu0 0.0
    %1549 = vmatpush2.msra.mxu0 0.0
    %1550 = vmatprep.mubr.f32.mxu0 0.0
    %v1551 = vand.u32 %v1292, 4294901760
    %1552 = vmatmul.mubr.f32.gmra.mxu0 %v1551
    %v1553 = vpop.f32.mrf.mxu0
    %v1554 = vadd.f32 %v1403, %v1553
    %v1555 = vpop.f32.mrf.mxu0
    %1556 = vdwg.mxu0
    %1557 = vmatprep.subr.mxu0 0.0
    %v1558 = vand.u32 %v1308, 4294901760
    %v1559 = vsub.f32 %v1308, %v1558
    %1560 = vmatpush1.msra.mxu0 %v1559
    %1561 = vmatprep.subr.mxu0 0.0
    %v1562 = vand.u32 %v1307, 4294901760
    %v1563 = vsub.f32 %v1307, %v1562
    %1564 = vmatpush1.msra.mxu0 %v1563
    %1565 = vmatprep.subr.mxu0 0.0
    %v1566 = vand.u32 %v1306, 4294901760
    %v1567 = vsub.f32 %v1306, %v1566
    %1568 = vmatpush1.msra.mxu0 %v1567
    %1569 = vmatprep.subr.mxu0 0.0
    %v1570 = vand.u32 %v1305, 4294901760
    %v1571 = vsub.f32 %v1305, %v1570
    %1572 = vmatpush1.msra.mxu0 %v1571
    %1573 = vmatprep.subr.mxu0 0.0
    %v1574 = vand.u32 %v1304, 4294901760
    %v1575 = vsub.f32 %v1304, %v1574
    %1576 = vmatpush1.msra.mxu0 %v1575
    %1577 = vmatprep.subr.mxu0 0.0
    %v1578 = vand.u32 %v1303, 4294901760
    %v1579 = vsub.f32 %v1303, %v1578
    %1580 = vmatpush1.msra.mxu0 %v1579
    %1581 = vmatprep.subr.mxu0 0.0
    %v1582 = vand.u32 %v1302, 4294901760
    %v1583 = vsub.f32 %v1302, %v1582
    %1584 = vmatpush1.msra.mxu0 %v1583
    %1585 = vmatprep.subr.mxu0 0.0
    %v1586 = vand.u32 %v1301, 4294901760
    %v1587 = vsub.f32 %v1301, %v1586
    %1588 = vmatpush1.msra.mxu0 %v1587
    %1589 = vmatprep.subr.mxu0 0.0
    %v1590 = vand.u32 %v1300, 4294901760
    %v1591 = vsub.f32 %v1300, %v1590
    %1592 = vmatpush1.msra.mxu0 %v1591
    %1593 = vmatprep.subr.mxu0 0.0
    %v1594 = vand.u32 %v1299, 4294901760
    %v1595 = vsub.f32 %v1299, %v1594
    %1596 = vmatpush1.msra.mxu0 %v1595
    %1597 = vmatprep.subr.mxu0 0.0
    %v1598 = vand.u32 %v1298, 4294901760
    %v1599 = vsub.f32 %v1298, %v1598
    %1600 = vmatpush1.msra.mxu0 %v1599
    %1601 = vmatprep.subr.mxu0 0.0
    %v1602 = vand.u32 %v1297, 4294901760
    %v1603 = vsub.f32 %v1297, %v1602
    %1604 = vmatpush1.msra.mxu0 %v1603
    %1605 = vmatprep.subr.mxu0 0.0
    %v1606 = vand.u32 %v1296, 4294901760
    %v1607 = vsub.f32 %v1296, %v1606
    %1608 = vmatpush1.msra.mxu0 %v1607
    %1609 = vmatprep.subr.mxu0 0.0
    %v1610 = vand.u32 %v1295, 4294901760
    %v1611 = vsub.f32 %v1295, %v1610
    %1612 = vmatpush1.msra.mxu0 %v1611
    %1613 = vmatprep.subr.mxu0 0.0
    %v1614 = vand.u32 %v1294, 4294901760
    %v1615 = vsub.f32 %v1294, %v1614
    %1616 = vmatpush1.msra.mxu0 %v1615
    %1617 = vmatprep.subr.mxu0 0.0
    %v1618 = vand.u32 %v1293, 4294901760
    %v1619 = vsub.f32 %v1293, %v1618
    %1620 = vmatpush1.msra.mxu0 %v1619
    %1621 = vmatprep.subr.mxu0 0.0
    %1622 = vmatpush2.msra.mxu0 0.0
    %1623 = vmatprep.subr.mxu0 0.0
    %1624 = vmatpush2.msra.mxu0 0.0
    %1625 = vmatprep.subr.mxu0 0.0
    %1626 = vmatpush2.msra.mxu0 0.0
    %1627 = vmatprep.subr.mxu0 0.0
    %1628 = vmatpush2.msra.mxu0 0.0
    %1629 = vmatprep.subr.mxu0 0.0
    %1630 = vmatpush2.msra.mxu0 0.0
    %1631 = vmatprep.subr.mxu0 0.0
    %1632 = vmatpush2.msra.mxu0 0.0
    %1633 = vmatprep.subr.mxu0 0.0
    %1634 = vmatpush2.msra.mxu0 0.0
    %1635 = vmatprep.subr.mxu0 0.0
    %1636 = vmatpush2.msra.mxu0 0.0
    %1637 = vmatprep.subr.mxu0 0.0
    %1638 = vmatpush2.msra.mxu0 0.0
    %1639 = vmatprep.subr.mxu0 0.0
    %1640 = vmatpush2.msra.mxu0 0.0
    %1641 = vmatprep.subr.mxu0 0.0
    %1642 = vmatpush2.msra.mxu0 0.0
    %1643 = vmatprep.subr.mxu0 0.0
    %1644 = vmatpush2.msra.mxu0 0.0
    %1645 = vmatprep.subr.mxu0 0.0
    %1646 = vmatpush2.msra.mxu0 0.0
    %1647 = vmatprep.subr.mxu0 0.0
    %1648 = vmatpush2.msra.mxu0 0.0
    %1649 = vmatprep.subr.mxu0 0.0
    %1650 = vmatpush2.msra.mxu0 0.0
    %1651 = vmatprep.subr.mxu0 0.0
    %1652 = vmatpush2.msra.mxu0 0.0
    %1653 = vmatprep.mubr.f32.mxu0 0.0
    %v1654 = vand.u32 %v1292, 4294901760
    %v1655 = vsub.f32 %v1292, %v1654
    %1656 = vmatmul.mubr.f32.gmra.mxu0 %v1655
    %v1657 = vpop.f32.mrf.mxu0
    %v1658 = vadd.f32 %v1554, %v1657
    %v1659 = vpop.f32.mrf.mxu0
    %1660 = vdwg.mxu0
    %1661 = vmatprep.subr.mxu0 0.0
    %v1662 = vand.u32 %v1308, 4294901760
    %1663 = vmatpush1.msra.mxu0 %v1662
    %1664 = vmatprep.subr.mxu0 0.0
    %v1665 = vand.u32 %v1307, 4294901760
    %1666 = vmatpush1.msra.mxu0 %v1665
    %1667 = vmatprep.subr.mxu0 0.0
    %v1668 = vand.u32 %v1306, 4294901760
    %1669 = vmatpush1.msra.mxu0 %v1668
    %1670 = vmatprep.subr.mxu0 0.0
    %v1671 = vand.u32 %v1305, 4294901760
    %1672 = vmatpush1.msra.mxu0 %v1671
    %1673 = vmatprep.subr.mxu0 0.0
    %v1674 = vand.u32 %v1304, 4294901760
    %1675 = vmatpush1.msra.mxu0 %v1674
    %1676 = vmatprep.subr.mxu0 0.0
    %v1677 = vand.u32 %v1303, 4294901760
    %1678 = vmatpush1.msra.mxu0 %v1677
    %1679 = vmatprep.subr.mxu0 0.0
    %v1680 = vand.u32 %v1302, 4294901760
    %1681 = vmatpush1.msra.mxu0 %v1680
    %1682 = vmatprep.subr.mxu0 0.0
    %v1683 = vand.u32 %v1301, 4294901760
    %1684 = vmatpush1.msra.mxu0 %v1683
    %1685 = vmatprep.subr.mxu0 0.0
    %v1686 = vand.u32 %v1300, 4294901760
    %1687 = vmatpush1.msra.mxu0 %v1686
    %1688 = vmatprep.subr.mxu0 0.0
    %v1689 = vand.u32 %v1299, 4294901760
    %1690 = vmatpush1.msra.mxu0 %v1689
    %1691 = vmatprep.subr.mxu0 0.0
    %v1692 = vand.u32 %v1298, 4294901760
    %1693 = vmatpush1.msra.mxu0 %v1692
    %1694 = vmatprep.subr.mxu0 0.0
    %v1695 = vand.u32 %v1297, 4294901760
    %1696 = vmatpush1.msra.mxu0 %v1695
    %1697 = vmatprep.subr.mxu0 0.0
    %v1698 = vand.u32 %v1296, 4294901760
    %1699 = vmatpush1.msra.mxu0 %v1698
    %1700 = vmatprep.subr.mxu0 0.0
    %v1701 = vand.u32 %v1295, 4294901760
    %1702 = vmatpush1.msra.mxu0 %v1701
    %1703 = vmatprep.subr.mxu0 0.0
    %v1704 = vand.u32 %v1294, 4294901760
    %1705 = vmatpush1.msra.mxu0 %v1704
    %1706 = vmatprep.subr.mxu0 0.0
    %v1707 = vand.u32 %v1293, 4294901760
    %1708 = vmatpush1.msra.mxu0 %v1707
    %1709 = vmatprep.subr.mxu0 0.0
    %1710 = vmatpush2.msra.mxu0 0.0
    %1711 = vmatprep.subr.mxu0 0.0
    %1712 = vmatpush2.msra.mxu0 0.0
    %1713 = vmatprep.subr.mxu0 0.0
    %1714 = vmatpush2.msra.mxu0 0.0
    %1715 = vmatprep.subr.mxu0 0.0
    %1716 = vmatpush2.msra.mxu0 0.0
    %1717 = vmatprep.subr.mxu0 0.0
    %1718 = vmatpush2.msra.mxu0 0.0
    %1719 = vmatprep.subr.mxu0 0.0
    %1720 = vmatpush2.msra.mxu0 0.0
    %1721 = vmatprep.subr.mxu0 0.0
    %1722 = vmatpush2.msra.mxu0 0.0
    %1723 = vmatprep.subr.mxu0 0.0
    %1724 = vmatpush2.msra.mxu0 0.0
    %1725 = vmatprep.subr.mxu0 0.0
    %1726 = vmatpush2.msra.mxu0 0.0
    %1727 = vmatprep.subr.mxu0 0.0
    %1728 = vmatpush2.msra.mxu0 0.0
    %1729 = vmatprep.subr.mxu0 0.0
    %1730 = vmatpush2.msra.mxu0 0.0
    %1731 = vmatprep.subr.mxu0 0.0
    %1732 = vmatpush2.msra.mxu0 0.0
    %1733 = vmatprep.subr.mxu0 0.0
    %1734 = vmatpush2.msra.mxu0 0.0
    %1735 = vmatprep.subr.mxu0 0.0
    %1736 = vmatpush2.msra.mxu0 0.0
    %1737 = vmatprep.subr.mxu0 0.0
    %1738 = vmatpush2.msra.mxu0 0.0
    %1739 = vmatprep.subr.mxu0 0.0
    %1740 = vmatpush2.msra.mxu0 0.0
    %1741 = vmatprep.mubr.f32.mxu0 0.0
    %v1742 = vand.u32 %v1292, 4294901760
    %v1743 = vsub.f32 %v1292, %v1742
    %v1744 = vand.u32 %v1743, 4294901760
    %1745 = vmatmul.mubr.f32.gmra.mxu0 %v1744
    %v1746 = vpop.f32.mrf.mxu0
    %v1747 = vadd.f32 %v1658, %v1746
    %v1748 = vpop.f32.mrf.mxu0
    %1749 = vdwg.mxu0
    %1750 = vmatprep.subr.mxu0 0.0
    %v1751 = vand.u32 %v1308, 4294901760
    %v1752 = vsub.f32 %v1308, %v1751
    %v1753 = vand.u32 %v1752, 4294901760
    %1754 = vmatpush1.msra.mxu0 %v1753
    %1755 = vmatprep.subr.mxu0 0.0
    %v1756 = vand.u32 %v1307, 4294901760
    %v1757 = vsub.f32 %v1307, %v1756
    %v1758 = vand.u32 %v1757, 4294901760
    %1759 = vmatpush1.msra.mxu0 %v1758
    %1760 = vmatprep.subr.mxu0 0.0
    %v1761 = vand.u32 %v1306, 4294901760
    %v1762 = vsub.f32 %v1306, %v1761
    %v1763 = vand.u32 %v1762, 4294901760
    %1764 = vmatpush1.msra.mxu0 %v1763
    %1765 = vmatprep.subr.mxu0 0.0
    %v1766 = vand.u32 %v1305, 4294901760
    %v1767 = vsub.f32 %v1305, %v1766
    %v1768 = vand.u32 %v1767, 4294901760
    %1769 = vmatpush1.msra.mxu0 %v1768
    %1770 = vmatprep.subr.mxu0 0.0
    %v1771 = vand.u32 %v1304, 4294901760
    %v1772 = vsub.f32 %v1304, %v1771
    %v1773 = vand.u32 %v1772, 4294901760
    %1774 = vmatpush1.msra.mxu0 %v1773
    %1775 = vmatprep.subr.mxu0 0.0
    %v1776 = vand.u32 %v1303, 4294901760
    %v1777 = vsub.f32 %v1303, %v1776
    %v1778 = vand.u32 %v1777, 4294901760
    %1779 = vmatpush1.msra.mxu0 %v1778
    %1780 = vmatprep.subr.mxu0 0.0
    %v1781 = vand.u32 %v1302, 4294901760
    %v1782 = vsub.f32 %v1302, %v1781
    %v1783 = vand.u32 %v1782, 4294901760
    %1784 = vmatpush1.msra.mxu0 %v1783
    %1785 = vmatprep.subr.mxu0 0.0
    %v1786 = vand.u32 %v1301, 4294901760
    %v1787 = vsub.f32 %v1301, %v1786
    %v1788 = vand.u32 %v1787, 4294901760
    %1789 = vmatpush1.msra.mxu0 %v1788
    %1790 = vmatprep.subr.mxu0 0.0
    %v1791 = vand.u32 %v1300, 4294901760
    %v1792 = vsub.f32 %v1300, %v1791
    %v1793 = vand.u32 %v1792, 4294901760
    %1794 = vmatpush1.msra.mxu0 %v1793
    %1795 = vmatprep.subr.mxu0 0.0
    %v1796 = vand.u32 %v1299, 4294901760
    %v1797 = vsub.f32 %v1299, %v1796
    %v1798 = vand.u32 %v1797, 4294901760
    %1799 = vmatpush1.msra.mxu0 %v1798
    %1800 = vmatprep.subr.mxu0 0.0
    %v1801 = vand.u32 %v1298, 4294901760
    %v1802 = vsub.f32 %v1298, %v1801
    %v1803 = vand.u32 %v1802, 4294901760
    %1804 = vmatpush1.msra.mxu0 %v1803
    %1805 = vmatprep.subr.mxu0 0.0
    %v1806 = vand.u32 %v1297, 4294901760
    %v1807 = vsub.f32 %v1297, %v1806
    %v1808 = vand.u32 %v1807, 4294901760
    %1809 = vmatpush1.msra.mxu0 %v1808
    %1810 = vmatprep.subr.mxu0 0.0
    %v1811 = vand.u32 %v1296, 4294901760
    %v1812 = vsub.f32 %v1296, %v1811
    %v1813 = vand.u32 %v1812, 4294901760
    %1814 = vmatpush1.msra.mxu0 %v1813
    %1815 = vmatprep.subr.mxu0 0.0
    %v1816 = vand.u32 %v1295, 4294901760
    %v1817 = vsub.f32 %v1295, %v1816
    %v1818 = vand.u32 %v1817, 4294901760
    %1819 = vmatpush1.msra.mxu0 %v1818
    %1820 = vmatprep.subr.mxu0 0.0
    %v1821 = vand.u32 %v1294, 4294901760
    %v1822 = vsub.f32 %v1294, %v1821
    %v1823 = vand.u32 %v1822, 4294901760
    %1824 = vmatpush1.msra.mxu0 %v1823
    %1825 = vmatprep.subr.mxu0 0.0
    %v1826 = vand.u32 %v1293, 4294901760
    %v1827 = vsub.f32 %v1293, %v1826
    %v1828 = vand.u32 %v1827, 4294901760
    %1829 = vmatpush1.msra.mxu0 %v1828
    %1830 = vmatprep.subr.mxu0 0.0
    %1831 = vmatpush2.msra.mxu0 0.0
    %1832 = vmatprep.subr.mxu0 0.0
    %1833 = vmatpush2.msra.mxu0 0.0
    %1834 = vmatprep.subr.mxu0 0.0
    %1835 = vmatpush2.msra.mxu0 0.0
    %1836 = vmatprep.subr.mxu0 0.0
    %1837 = vmatpush2.msra.mxu0 0.0
    %1838 = vmatprep.subr.mxu0 0.0
    %1839 = vmatpush2.msra.mxu0 0.0
    %1840 = vmatprep.subr.mxu0 0.0
    %1841 = vmatpush2.msra.mxu0 0.0
    %1842 = vmatprep.subr.mxu0 0.0
    %1843 = vmatpush2.msra.mxu0 0.0
    %1844 = vmatprep.subr.mxu0 0.0
    %1845 = vmatpush2.msra.mxu0 0.0
    %1846 = vmatprep.subr.mxu0 0.0
    %1847 = vmatpush2.msra.mxu0 0.0
    %1848 = vmatprep.subr.mxu0 0.0
    %1849 = vmatpush2.msra.mxu0 0.0
    %1850 = vmatprep.subr.mxu0 0.0
    %1851 = vmatpush2.msra.mxu0 0.0
    %1852 = vmatprep.subr.mxu0 0.0
    %1853 = vmatpush2.msra.mxu0 0.0
    %1854 = vmatprep.subr.mxu0 0.0
    %1855 = vmatpush2.msra.mxu0 0.0
    %1856 = vmatprep.subr.mxu0 0.0
    %1857 = vmatpush2.msra.mxu0 0.0
    %1858 = vmatprep.subr.mxu0 0.0
    %1859 = vmatpush2.msra.mxu0 0.0
    %1860 = vmatprep.subr.mxu0 0.0
    %1861 = vmatpush2.msra.mxu0 0.0
    %1862 = vmatprep.mubr.f32.mxu0 0.0
    %v1863 = vand.u32 %v1292, 4294901760
    %1864 = vmatmul.mubr.f32.gmra.mxu0 %v1863
    %v1865 = vpop.f32.mrf.mxu0
    %v1866 = vadd.f32 %v1747, %v1865
    %v1867 = vpop.f32.mrf.mxu0
    %1868 = vdwg.mxu0
    %1869 = vmatprep.subr.mxu0 0.0
    %v1870 = vand.u32 %v1308, 4294901760
    %1871 = vmatpush1.msra.mxu0 %v1870
    %1872 = vmatprep.subr.mxu0 0.0
    %v1873 = vand.u32 %v1307, 4294901760
    %1874 = vmatpush1.msra.mxu0 %v1873
    %1875 = vmatprep.subr.mxu0 0.0
    %v1876 = vand.u32 %v1306, 4294901760
    %1877 = vmatpush1.msra.mxu0 %v1876
    %1878 = vmatprep.subr.mxu0 0.0
    %v1879 = vand.u32 %v1305, 4294901760
    %1880 = vmatpush1.msra.mxu0 %v1879
    %1881 = vmatprep.subr.mxu0 0.0
    %v1882 = vand.u32 %v1304, 4294901760
    %1883 = vmatpush1.msra.mxu0 %v1882
    %1884 = vmatprep.subr.mxu0 0.0
    %v1885 = vand.u32 %v1303, 4294901760
    %1886 = vmatpush1.msra.mxu0 %v1885
    %1887 = vmatprep.subr.mxu0 0.0
    %v1888 = vand.u32 %v1302, 4294901760
    %1889 = vmatpush1.msra.mxu0 %v1888
    %1890 = vmatprep.subr.mxu0 0.0
    %v1891 = vand.u32 %v1301, 4294901760
    %1892 = vmatpush1.msra.mxu0 %v1891
    %1893 = vmatprep.subr.mxu0 0.0
    %v1894 = vand.u32 %v1300, 4294901760
    %1895 = vmatpush1.msra.mxu0 %v1894
    %1896 = vmatprep.subr.mxu0 0.0
    %v1897 = vand.u32 %v1299, 4294901760
    %1898 = vmatpush1.msra.mxu0 %v1897
    %1899 = vmatprep.subr.mxu0 0.0
    %v1900 = vand.u32 %v1298, 4294901760
    %1901 = vmatpush1.msra.mxu0 %v1900
    %1902 = vmatprep.subr.mxu0 0.0
    %v1903 = vand.u32 %v1297, 4294901760
    %1904 = vmatpush1.msra.mxu0 %v1903
    %1905 = vmatprep.subr.mxu0 0.0
    %v1906 = vand.u32 %v1296, 4294901760
    %1907 = vmatpush1.msra.mxu0 %v1906
    %1908 = vmatprep.subr.mxu0 0.0
    %v1909 = vand.u32 %v1295, 4294901760
    %1910 = vmatpush1.msra.mxu0 %v1909
    %1911 = vmatprep.subr.mxu0 0.0
    %v1912 = vand.u32 %v1294, 4294901760
    %1913 = vmatpush1.msra.mxu0 %v1912
    %1914 = vmatprep.subr.mxu0 0.0
    %v1915 = vand.u32 %v1293, 4294901760
    %1916 = vmatpush1.msra.mxu0 %v1915
    %1917 = vmatprep.subr.mxu0 0.0
    %1918 = vmatpush2.msra.mxu0 0.0
    %1919 = vmatprep.subr.mxu0 0.0
    %1920 = vmatpush2.msra.mxu0 0.0
    %1921 = vmatprep.subr.mxu0 0.0
    %1922 = vmatpush2.msra.mxu0 0.0
    %1923 = vmatprep.subr.mxu0 0.0
    %1924 = vmatpush2.msra.mxu0 0.0
    %1925 = vmatprep.subr.mxu0 0.0
    %1926 = vmatpush2.msra.mxu0 0.0
    %1927 = vmatprep.subr.mxu0 0.0
    %1928 = vmatpush2.msra.mxu0 0.0
    %1929 = vmatprep.subr.mxu0 0.0
    %1930 = vmatpush2.msra.mxu0 0.0
    %1931 = vmatprep.subr.mxu0 0.0
    %1932 = vmatpush2.msra.mxu0 0.0
    %1933 = vmatprep.subr.mxu0 0.0
    %1934 = vmatpush2.msra.mxu0 0.0
    %1935 = vmatprep.subr.mxu0 0.0
    %1936 = vmatpush2.msra.mxu0 0.0
    %1937 = vmatprep.subr.mxu0 0.0
    %1938 = vmatpush2.msra.mxu0 0.0
    %1939 = vmatprep.subr.mxu0 0.0
    %1940 = vmatpush2.msra.mxu0 0.0
    %1941 = vmatprep.subr.mxu0 0.0
    %1942 = vmatpush2.msra.mxu0 0.0
    %1943 = vmatprep.subr.mxu0 0.0
    %1944 = vmatpush2.msra.mxu0 0.0
    %1945 = vmatprep.subr.mxu0 0.0
    %1946 = vmatpush2.msra.mxu0 0.0
    %1947 = vmatprep.subr.mxu0 0.0
    %1948 = vmatpush2.msra.mxu0 0.0
    %1949 = vmatprep.mubr.f32.mxu0 0.0
    %v1950 = vand.u32 %v1292, 4294901760
    %1951 = vmatmul.mubr.f32.gmra.mxu0 %v1950
    %v1952 = vpop.f32.mrf.mxu0
    %v1953 = vadd.f32 %v1866, %v1952
    %v1954 = vpop.f32.mrf.mxu0
    %1955 = vdwg.mxu0
    %1956 = vst [vmem:[#allocation10] sm:$0xff] %v1953
    // Predicated region
    $region62: #{tpu_custom_call.1} parent=1 // pred_check
      _
    $region63: #{tpu_custom_call.1} parent=1 // pred_check_branch
      %1958 = sbr.rel (0) target = $region65
    $region64: #{tpu_custom_call.1} parent=1 // pred_region
      %s1960 = ssub.s32 128, 128
      %1961 = vsyncadd [#allocation4], %s1960
      %s1963 = sshll.u32 [#allocation10], 4
      %s1964 = int_to_ptr.vmem [resolvable:$true] %s1963
      %1966 = dma.vmem_to_hbm [thread:$0]  %s1964, 128, %s11, [#allocation4]
    $region65: #{tpu_custom_call.1} parent=1 // pred_fallthru
      _
    // Predicated region
    $region66: #{tpu_custom_call.1} parent=1 // pred_check
      _
    $region67: #{tpu_custom_call.1} parent=1 // pred_check_branch
      %1968 = sbr.rel (0) target = $region69
    $region68: #{tpu_custom_call.1} parent=1 // pred_region
      %1969 = dma.done [#allocation4], 128
    $region69: #{tpu_custom_call.1} parent=1 // pred_fallthru
      _
    %1970 = vsyncpa [#allocation3], 1
    %1971 = vsyncpa [#allocation6], 1
    %1972 = vsyncpa [#allocation9], 1
    %1973 = vsyncpa [#allocation4], 1

</llo_original>
